<compile_context>
chip_gen: v7x
topology: tpu7x:2x2x1
jax: 0.10.0
libtpu: 0.0.40
codegen_flags: <defaults>
</compile_context>

<pallas_src>
import functools

import numpy as np
import jax
import jax.numpy as jnp
from jax.experimental import pallas as pl
from jax.experimental.pallas import tpu as pltpu

_EPS = 1e-5


# ----------------------------------------------------------------------------
# DFT operator matrices (built once at init, in float64, cast to f32)
# ----------------------------------------------------------------------------
def dft_matrices(H, W):
    """Real 2-D DFT operators matching torch.fft.rfftn/irfftn (norm='ortho').

    Forward :  R = Y @ Er , I = Y @ Ei    with Y  : (c, H*W)  (row-major h, w)
    Inverse :  y = A @ Ga + B @ Gb        with A/B: (c, H*Wf), Wf = W//2 + 1
    The inverse encodes the c2r convention (imaginary parts of the DC and
    Nyquist columns are dropped), exactly like irfftn on non-Hermitian input.
    """
    Wf = W // 2 + 1
    h = np.arange(H)
    w = np.arange(W)
    u = np.arange(H)
    v = np.arange(Wf)
    # ang[h, w, u, v] = 2*pi*(u*h/H + v*w/W)
    ang = 2.0 * np.pi * (
        (u[None, None, :, None] * h[:, None, None, None]) / H
        + (v[None, None, None, :] * w[None, :, None, None]) / W)
    s = np.sqrt(H * W)
    er = (np.cos(ang) / s).reshape(H * W, H * Wf)
    ei = (-np.sin(ang) / s).reshape(H * W, H * Wf)

    cv = np.full((Wf,), 2.0)
    cv[0] = 1.0
    if W % 2 == 0:
        cv[-1] = 1.0
    ang_t = np.transpose(ang, (2, 3, 0, 1))            # (u, v, h, w)
    ga = (cv[None, :, None, None] * np.cos(ang_t) / s).reshape(H * Wf, H * W)
    gb = (-cv[None, :, None, None] * np.sin(ang_t) / s).reshape(H * Wf, H * W)
    return (jnp.asarray(er, jnp.float32), jnp.asarray(ei, jnp.float32),
            jnp.asarray(ga, jnp.float32), jnp.asarray(gb, jnp.float32))


# ----------------------------------------------------------------------------
# Pallas kernels (all operate on one image per grid step, (C, H*W) blocks)
# ----------------------------------------------------------------------------
def _k1_local_conv1(x_ref, wl2l_ref, wg2l_ref, wc1_ref,
                    oxl_ref, t1_ref, s1_ref, q1_ref, *, in_cl):
    x = x_ref[...]                                 # (C, HW)
    x_l = x[:in_cl, :]
    x_g = x[in_cl:, :]
    # out_xl = convl2l(x_l) + convg2l(x_g)   (fused)
    oxl_ref[...] = (
        jnp.dot(wl2l_ref[...], x_l, preferred_element_type=jnp.float32)
        + jnp.dot(wg2l_ref[...], x_g, preferred_element_type=jnp.float32))
    # SpectralTransform.conv1 pre-BN, plus its one-pass BN moments.
    t1 = jnp.dot(wc1_ref[...], x_g, preferred_element_type=jnp.float32)
    t1_ref[...] = t1
    s1_ref[...] = jnp.sum(t1, axis=1, keepdims=True)
    q1_ref[...] = jnp.sum(t1 * t1, axis=1, keepdims=True)


def _k2_spectral_fwd(t1_ref, sc1_ref, sh1_ref, er_ref, ei_ref,
                     wfur_ref, wfui_ref, t2_ref, s2_ref, q2_ref):
    # BN1 + ReLU fused as an epilogue on t1 (precomputed scale/shift).
    y = jnp.maximum(t1_ref[...] * sc1_ref[...] + sh1_ref[...], 0.0)   # (ch, HW)
    # rfft2 via DFT-operator matmuls (MXU), block [real ; imag] channels.
    r = jnp.dot(y, er_ref[...], preferred_element_type=jnp.float32)   # (ch, HWf)
    i = jnp.dot(y, ei_ref[...], preferred_element_type=jnp.float32)
    # FourierUnit conv (1x1) pre-BN, plus its one-pass BN moments.
    t2 = (jnp.dot(wfur_ref[...], r, preferred_element_type=jnp.float32)
          + jnp.dot(wfui_ref[...], i, preferred_element_type=jnp.float32))
    t2_ref[...] = t2
    s2_ref[...] = jnp.sum(t2, axis=1, keepdims=True)
    q2_ref[...] = jnp.sum(t2 * t2, axis=1, keepdims=True)


def _k3_spectral_out(x_ref, t1_ref, sc1_ref, sh1_ref, t2_ref, sc2_ref, sh2_ref,
                     ga_ref, gb_ref, wc2_ref, wl2g_ref, oxg_ref,
                     *, in_cl, c_half):
    x_l = x_ref[...][:in_cl, :]
    # Recompute y (cheap elementwise) instead of round-tripping it via HBM.
    y = jnp.maximum(t1_ref[...] * sc1_ref[...] + sh1_ref[...], 0.0)
    # BN2 + ReLU on the spectral conv output.
    z = jnp.maximum(t2_ref[...] * sc2_ref[...] + sh2_ref[...], 0.0)
    zr = z[:c_half, :]
    zi = z[c_half:, :]
    # irfft2 via DFT-operator matmuls.
    fu = (jnp.dot(zr, ga_ref[...], preferred_element_type=jnp.float32)
          + jnp.dot(zi, gb_ref[...], preferred_element_type=jnp.float32))
    # out_xg = conv2(y + fu) + convl2g(x_l)   -- convl2g folded in (no HBM temp).
    oxg_ref[...] = (
        jnp.dot(wc2_ref[...], y + fu, preferred_element_type=jnp.float32)
        + jnp.dot(wl2g_ref[...], x_l, preferred_element_type=jnp.float32))


# ----------------------------------------------------------------------------
# Wrapper
# ----------------------------------------------------------------------------
def _bn_affine(s, q, gamma, beta, n):
    """Finalize training-mode BN from per-image (sum, sumsq) moments (tiny)."""
    mean = jnp.sum(s, axis=0) / n                    # (C, 1)
    ex2 = jnp.sum(q, axis=0) / n
    var = ex2 - mean * mean                          # biased, as PyTorch uses
    scale = gamma * jax.lax.rsqrt(var + _EPS)
    shift = beta - mean * scale
    return scale, shift


def ffc_forward(x_nchw, params, dft):
    B, C, H, W = x_nchw.shape
    HW = H * W
    Wf = W // 2 + 1
    HWf = H * Wf
    in_cl = C // 2                                   # ratio_gin = 0.5 (even C)
    in_cg = C - in_cl
    out_cl = params["w_l2l"].shape[0]
    out_cg = params["w_c2"].shape[0]
    c_half = params["w_c1"].shape[0]
    er, ei, ga, gb = dft

    # NCHW flattened over spatial dims == (C, H*W) lane-dense layout: no transpose.
    x = x_nchw.reshape(B, C, HW)
    kp = pltpu.CompilerParams(dimension_semantics=("parallel",))

    # ---- K1: local branch + conv1 + BN1 moments ----
    out_xl, t1, s1, q1 = pl.pallas_call(
        functools.partial(_k1_local_conv1, in_cl=in_cl),
        grid=(B,),
        in_specs=[
            pl.BlockSpec((None, C, HW), lambda b: (b, 0, 0)),
            pl.BlockSpec((out_cl, in_cl), lambda b: (0, 0)),
            pl.BlockSpec((out_cl, in_cg), lambda b: (0, 0)),
            pl.BlockSpec((c_half, in_cg), lambda b: (0, 0)),
        ],
        out_specs=[
            pl.BlockSpec((None, out_cl, HW), lambda b: (b, 0, 0)),
            pl.BlockSpec((None, c_half, HW), lambda b: (b, 0, 0)),
            pl.BlockSpec((None, c_half, 1), lambda b: (b, 0, 0)),
            pl.BlockSpec((None, c_half, 1), lambda b: (b, 0, 0)),
        ],
        out_shape=[
            jax.ShapeDtypeStruct((B, out_cl, HW), jnp.float32),
            jax.ShapeDtypeStruct((B, c_half, HW), jnp.float32),
            jax.ShapeDtypeStruct((B, c_half, 1), jnp.float32),
            jax.ShapeDtypeStruct((B, c_half, 1), jnp.float32),
        ],
        compiler_params=kp,
    )(x, params["w_l2l"], params["w_g2l"], params["w_c1"])

    # TODO(synk): the O(C)-sized cross-batch BN finalization stays in jnp; a
    # grid-sequential in-kernel reduction could remove these tiny wrapper ops.
    scale1, shift1 = _bn_affine(s1, q1, params["bn1_g"], params["bn1_b"], B * HW)

    # ---- K2: BN1+ReLU, rfft2 (DFT matmuls), FourierUnit conv + BN2 moments ----
    t2, s2, q2 = pl.pallas_call(
        _k2_spectral_fwd,
        grid=(B,),
        in_specs=[
            pl.BlockSpec((None, c_half, HW), lambda b: (b, 0, 0)),
            pl.BlockSpec((c_half, 1), lambda b: (0, 0)),
            pl.BlockSpec((c_half, 1), lambda b: (0, 0)),
            pl.BlockSpec((HW, HWf), lambda b: (0, 0)),
            pl.BlockSpec((HW, HWf), lambda b: (0, 0)),
            pl.BlockSpec((2 * c_half, c_half), lambda b: (0, 0)),
            pl.BlockSpec((2 * c_half, c_half), lambda b: (0, 0)),
        ],
        out_specs=[
            pl.BlockSpec((None, 2 * c_half, HWf), lambda b: (b, 0, 0)),
            pl.BlockSpec((None, 2 * c_half, 1), lambda b: (b, 0, 0)),
            pl.BlockSpec((None, 2 * c_half, 1), lambda b: (b, 0, 0)),
        ],
        out_shape=[
            jax.ShapeDtypeStruct((B, 2 * c_half, HWf), jnp.float32),
            jax.ShapeDtypeStruct((B, 2 * c_half, 1), jnp.float32),
            jax.ShapeDtypeStruct((B, 2 * c_half, 1), jnp.float32),
        ],
        compiler_params=kp,
    )(t1, scale1, shift1, er, ei, params["w_fu_r"], params["w_fu_i"])

    scale2, shift2 = _bn_affine(s2, q2, params["bn2_g"], params["bn2_b"], B * HWf)

    # ---- K3: BN2+ReLU, irfft2 (DFT matmuls), conv2 + convl2g fused ----
    out_xg = pl.pallas_call(
        functools.partial(_k3_spectral_out, in_cl=in_cl, c_half=c_half),
        grid=(B,),
        in_specs=[
            pl.BlockSpec((None, C, HW), lambda b: (b, 0, 0)),
            pl.BlockSpec((None, c_half, HW), lambda b: (b, 0, 0)),
            pl.BlockSpec((c_half, 1), lambda b: (0, 0)),
            pl.BlockSpec((c_half, 1), lambda b: (0, 0)),
            pl.BlockSpec((None, 2 * c_half, HWf), lambda b: (b, 0, 0)),
            pl.BlockSpec((2 * c_half, 1), lambda b: (0, 0)),
            pl.BlockSpec((2 * c_half, 1), lambda b: (0, 0)),
            pl.BlockSpec((HWf, HW), lambda b: (0, 0)),
            pl.BlockSpec((HWf, HW), lambda b: (0, 0)),
            pl.BlockSpec((out_cg, c_half), lambda b: (0, 0)),
            pl.BlockSpec((out_cg, in_cl), lambda b: (0, 0)),
        ],
        out_specs=pl.BlockSpec((None, out_cg, HW), lambda b: (b, 0, 0)),
        out_shape=jax.ShapeDtypeStruct((B, out_cg, HW), jnp.float32),
        compiler_params=kp,
    )(x, t1, scale1, shift1, t2, scale2, shift2, ga, gb,
      params["w_c2"], params["w_l2g"])

    out = jnp.concatenate([out_xl, out_xg], axis=1)
    return out.reshape(B, out_cl + out_cg, H, W)


# ----------------------------------------------------------------------------
# Synthetic parameters (FFC ratio 0.5, ks=1, no bias, fresh BN)
# ----------------------------------------------------------------------------
def init_params(key, in_channels, out_channels):
    in_cg = in_channels // 2
    in_cl = in_channels - in_cg
    out_cg = out_channels // 2
    out_cl = out_channels - out_cg
    c_half = out_cg // 2
    ks = jax.random.split(key, 7)

    def w(k, cout, cin):
        # 1x1 conv weight stored (Cout, Cin): y = W @ x in the (C, P) layout.
        return jax.random.normal(k, (cout, cin), jnp.float32) / np.sqrt(cin)

    return {
        "w_l2l": w(ks[0], out_cl, in_cl),
        "w_g2l": w(ks[1], out_cl, in_cg),
        "w_l2g": w(ks[2], out_cg, in_cl),
        # SpectralTransform.conv1 + BN
        "w_c1": w(ks[3], c_half, in_cg),
        "bn1_g": jnp.ones((c_half, 1), jnp.float32),
        "bn1_b": jnp.zeros((c_half, 1), jnp.float32),
        # FourierUnit conv in block [real ; imag] channel layout (a PyTorch
        # interleaved-r/i weight would be permuted to this layout once at load).
        "w_fu_r": w(ks[4], 2 * c_half, c_half),
        "w_fu_i": w(ks[5], 2 * c_half, c_half),
        "bn2_g": jnp.ones((2 * c_half, 1), jnp.float32),
        "bn2_b": jnp.zeros((2 * c_half, 1), jnp.float32),
        # SpectralTransform.conv2
        "w_c2": w(ks[6], out_cg, c_half),
    }


# ----------------------------------------------------------------------------
# Pure-JAX reference (mirrors the PyTorch module, uses jnp.fft) for validation
# ----------------------------------------------------------------------------
def ffc_reference(x, params):
    B, C, H, W = x.shape
    in_cl = C // 2
    c_half = params["w_c1"].shape[0]
    x_l, x_g = x[:, :in_cl], x[:, in_cl:]

    def conv(wt, t):
        return jnp.einsum("oc,bchw->bohw", wt, t)

    def bn_relu(t, g, b):
        mean = jnp.mean(t, axis=(0, 2, 3), keepdims=True)
        var = jnp.mean((t - mean) ** 2, axis=(0, 2, 3), keepdims=True)
        tn = (t - mean) * jax.lax.rsqrt(var + _EPS)
        return jnp.maximum(tn * g.reshape(1, -1, 1, 1) + b.reshape(1, -1, 1, 1), 0.0)

    out_xl = conv(params["w_l2l"], x_l) + conv(params["w_g2l"], x_g)
    y = bn_relu(conv(params["w_c1"], x_g), params["bn1_g"], params["bn1_b"])
    ff = jnp.fft.rfftn(y, axes=(2, 3), norm="ortho")
    s_block = jnp.concatenate([ff.real, ff.imag], axis=1)
    w_fu = jnp.concatenate([params["w_fu_r"], params["w_fu_i"]], axis=1)
    z = bn_relu(conv(w_fu, s_block), params["bn2_g"], params["bn2_b"])
    zc = jax.lax.complex(z[:, :c_half], z[:, c_half:])
    fu = jnp.fft.irfftn(zc, s=(H, W), axes=(2, 3), norm="ortho")
    out_xg = conv(params["w_l2g"], x_l) + conv(params["w_c2"], y + fu)
    return jnp.concatenate([out_xl, out_xg], axis=1)


if __name__ == "__main__":
    key = jax.random.PRNGKey(0)
    k_x, k_p = jax.random.split(key)

    B, C, H, W = 2, 8, 16, 16
    x = jax.random.normal(k_x, (B, C, H, W), jnp.float32)
    params = init_params(k_p, in_channels=C, out_channels=C)
    dft = dft_matrices(H, W)

    fwd = jax.jit(ffc_forward)
    out = fwd(x, params, dft)
    jax.block_until_ready(out)
    assert out.shape == (B, C, H, W), out.shape

    ref = jax.jit(ffc_reference)(x, params)
    err = float(jnp.max(jnp.abs(out - ref)))
    assert err < 3e-3, err

    print("KERNEL_OK")
</pallas_src>

<mosaic_0001>
module attributes {stable_mosaic.version = 11 : i64} {
  func.func @_k1_local_conv1(%arg0: i32, %arg1: memref<1x8x256xf32, #tpu.memory_space<vmem>>, %arg2: memref<4x4xf32, #tpu.memory_space<vmem>>, %arg3: memref<4x4xf32, #tpu.memory_space<vmem>>, %arg4: memref<2x4xf32, #tpu.memory_space<vmem>>, %arg5: memref<1x4x256xf32, #tpu.memory_space<vmem>>, %arg6: memref<1x2x256xf32, #tpu.memory_space<vmem>>, %arg7: memref<1x2x1xf32, #tpu.memory_space<vmem>>, %arg8: memref<1x2x1xf32, #tpu.memory_space<vmem>>) attributes {dimension_semantics = [#tpu.dimension_semantics<parallel>], iteration_bounds = array<i64: 2>, scalar_prefetch = 0 : i64, scratch_operands = 0 : i64, tpu.core_type = #tpu.core_type<tc>, window_params = [{transform_indices = @transform_0, window_bounds = array<i64: 1, 8, 256>}, {pipeline_mode = #tpu.pipeline_mode<synchronous>, transform_indices = @transform_1, window_bounds = array<i64: 4, 4>}, {pipeline_mode = #tpu.pipeline_mode<synchronous>, transform_indices = @transform_2, window_bounds = array<i64: 4, 4>}, {pipeline_mode = #tpu.pipeline_mode<synchronous>, transform_indices = @transform_3, window_bounds = array<i64: 2, 4>}, {transform_indices = @transform_4, window_bounds = array<i64: 1, 4, 256>}, {transform_indices = @transform_5, window_bounds = array<i64: 1, 2, 256>}, {transform_indices = @transform_6, window_bounds = array<i64: 1, 2, 1>}, {transform_indices = @transform_7, window_bounds = array<i64: 1, 2, 1>}]} {
    %c0 = arith.constant 0 : index
    %c0_0 = arith.constant 0 : index
    %c0_1 = arith.constant 0 : index
    %0 = vector.load %arg1[%c0, %c0_0, %c0_1] : memref<1x8x256xf32, #tpu.memory_space<vmem>>, vector<1x8x256xf32>
    %1 = vector.shape_cast %0 : vector<1x8x256xf32> to vector<8x256xf32>
    %2 = vector.extract_strided_slice %1 {offsets = [0, 0], sizes = [4, 256], strides = [1, 1]} : vector<8x256xf32> to vector<4x256xf32>
    %3 = vector.extract_strided_slice %1 {offsets = [4, 0], sizes = [4, 256], strides = [1, 1]} : vector<8x256xf32> to vector<4x256xf32>
    %c0_2 = arith.constant 0 : index
    %c0_3 = arith.constant 0 : index
    %4 = vector.load %arg2[%c0_2, %c0_3] : memref<4x4xf32, #tpu.memory_space<vmem>>, vector<4x4xf32>
    %cst = arith.constant dense<0.000000e+00> : vector<4x256xf32>
    %5 = tpu.matmul %4, %2, %cst {dimension_numbers = #tpu.dot_dimension_numbers<[1], [0], [0], [1], [0, 0, 1, 1], [], []>} : vector<4x4xf32>, vector<4x256xf32>, vector<4x256xf32> -> vector<4x256xf32>
    %c0_4 = arith.constant 0 : index
    %c0_5 = arith.constant 0 : index
    %6 = vector.load %arg3[%c0_4, %c0_5] : memref<4x4xf32, #tpu.memory_space<vmem>>, vector<4x4xf32>
    %cst_6 = arith.constant dense<0.000000e+00> : vector<4x256xf32>
    %7 = tpu.matmul %6, %3, %cst_6 {dimension_numbers = #tpu.dot_dimension_numbers<[1], [0], [0], [1], [0, 0, 1, 1], [], []>} : vector<4x4xf32>, vector<4x256xf32>, vector<4x256xf32> -> vector<4x256xf32>
    %8 = arith.addf %5, %7 : vector<4x256xf32>
    %c0_7 = arith.constant 0 : index
    %c0_8 = arith.constant 0 : index
    %c0_9 = arith.constant 0 : index
    %9 = vector.load %arg5[%c0_7, %c0_8, %c0_9] : memref<1x4x256xf32, #tpu.memory_space<vmem>>, vector<1x4x256xf32>
    %10 = vector.shape_cast %9 : vector<1x4x256xf32> to vector<4x256xf32>
    %11 = vector.shape_cast %8 : vector<4x256xf32> to vector<1x4x256xf32>
    tpu.vector_store %arg5[%c0_7, %c0_8, %c0_9], %11 {strides = array<i32>} : memref<1x4x256xf32, #tpu.memory_space<vmem>>, vector<1x4x256xf32>,
    %c0_10 = arith.constant 0 : index
    %c0_11 = arith.constant 0 : index
    %12 = vector.load %arg4[%c0_10, %c0_11] : memref<2x4xf32, #tpu.memory_space<vmem>>, vector<2x4xf32>
    %cst_12 = arith.constant dense<0.000000e+00> : vector<2x256xf32>
    %13 = tpu.matmul %12, %3, %cst_12 {dimension_numbers = #tpu.dot_dimension_numbers<[1], [0], [0], [1], [0, 0, 1, 1], [], []>} : vector<2x4xf32>, vector<4x256xf32>, vector<2x256xf32> -> vector<2x256xf32>
    %c0_13 = arith.constant 0 : index
    %c0_14 = arith.constant 0 : index
    %c0_15 = arith.constant 0 : index
    %14 = vector.load %arg6[%c0_13, %c0_14, %c0_15] : memref<1x2x256xf32, #tpu.memory_space<vmem>>, vector<1x2x256xf32>
    %15 = vector.shape_cast %14 : vector<1x2x256xf32> to vector<2x256xf32>
    %16 = vector.shape_cast %13 : vector<2x256xf32> to vector<1x2x256xf32>
    tpu.vector_store %arg6[%c0_13, %c0_14, %c0_15], %16 {strides = array<i32>} : memref<1x2x256xf32, #tpu.memory_space<vmem>>, vector<1x2x256xf32>,
    %cst_16 = arith.constant dense<0.000000e+00> : vector<2xf32>
    %17 = vector.multi_reduction <add>, %13, %cst_16 [1] : vector<2x256xf32> to vector<2xf32>
    %18 = vector.shape_cast %17 : vector<2xf32> to vector<2x1xf32>
    %c0_17 = arith.constant 0 : index
    %c0_18 = arith.constant 0 : index
    %c0_19 = arith.constant 0 : index
    %19 = vector.load %arg7[%c0_17, %c0_18, %c0_19] : memref<1x2x1xf32, #tpu.memory_space<vmem>>, vector<1x2x1xf32>
    %20 = vector.shape_cast %19 : vector<1x2x1xf32> to vector<2x1xf32>
    %21 = vector.shape_cast %18 : vector<2x1xf32> to vector<1x2x1xf32>
    tpu.vector_store %arg7[%c0_17, %c0_18, %c0_19], %21 {strides = array<i32>} : memref<1x2x1xf32, #tpu.memory_space<vmem>>, vector<1x2x1xf32>,
    %22 = arith.mulf %13, %13 : vector<2x256xf32>
    %cst_20 = arith.constant dense<0.000000e+00> : vector<2xf32>
    %23 = vector.multi_reduction <add>, %22, %cst_20 [1] : vector<2x256xf32> to vector<2xf32>
    %24 = vector.shape_cast %23 : vector<2xf32> to vector<2x1xf32>
    %c0_21 = arith.constant 0 : index
    %c0_22 = arith.constant 0 : index
    %c0_23 = arith.constant 0 : index
    %25 = vector.load %arg8[%c0_21, %c0_22, %c0_23] : memref<1x2x1xf32, #tpu.memory_space<vmem>>, vector<1x2x1xf32>
    %26 = vector.shape_cast %25 : vector<1x2x1xf32> to vector<2x1xf32>
    %27 = vector.shape_cast %24 : vector<2x1xf32> to vector<1x2x1xf32>
    tpu.vector_store %arg8[%c0_21, %c0_22, %c0_23], %27 {strides = array<i32>} : memref<1x2x1xf32, #tpu.memory_space<vmem>>, vector<1x2x1xf32>,
    return
  }
  func.func @transform_0(%arg0: i32) -> (i32, i32, i32) {
    %c0_i32 = arith.constant 0 : i32
    %c0_i32_0 = arith.constant 0 : i32
    %c0_i32_1 = arith.constant 0 : i32
    return %arg0, %c0_i32, %c0_i32_0 : i32, i32, i32
  }
  func.func @transform_1(%arg0: i32) -> (i32, i32) {
    %c0_i32 = arith.constant 0 : i32
    %c0_i32_0 = arith.constant 0 : i32
    %c0_i32_1 = arith.constant 0 : i32
    return %c0_i32, %c0_i32_0 : i32, i32
  }
  func.func @transform_2(%arg0: i32) -> (i32, i32) {
    %c0_i32 = arith.constant 0 : i32
    %c0_i32_0 = arith.constant 0 : i32
    %c0_i32_1 = arith.constant 0 : i32
    return %c0_i32, %c0_i32_0 : i32, i32
  }
  func.func @transform_3(%arg0: i32) -> (i32, i32) {
    %c0_i32 = arith.constant 0 : i32
    %c0_i32_0 = arith.constant 0 : i32
    %c0_i32_1 = arith.constant 0 : i32
    return %c0_i32, %c0_i32_0 : i32, i32
  }
  func.func @transform_4(%arg0: i32) -> (i32, i32, i32) {
    %c0_i32 = arith.constant 0 : i32
    %c0_i32_0 = arith.constant 0 : i32
    %c0_i32_1 = arith.constant 0 : i32
    return %arg0, %c0_i32, %c0_i32_0 : i32, i32, i32
  }
  func.func @transform_5(%arg0: i32) -> (i32, i32, i32) {
    %c0_i32 = arith.constant 0 : i32
    %c0_i32_0 = arith.constant 0 : i32
    %c0_i32_1 = arith.constant 0 : i32
    return %arg0, %c0_i32, %c0_i32_0 : i32, i32, i32
  }
  func.func @transform_6(%arg0: i32) -> (i32, i32, i32) {
    %c0_i32 = arith.constant 0 : i32
    %c0_i32_0 = arith.constant 0 : i32
    %c0_i32_1 = arith.constant 0 : i32
    return %arg0, %c0_i32, %c0_i32_0 : i32, i32, i32
  }
  func.func @transform_7(%arg0: i32) -> (i32, i32, i32) {
    %c0_i32 = arith.constant 0 : i32
    %c0_i32_0 = arith.constant 0 : i32
    %c0_i32_1 = arith.constant 0 : i32
    return %arg0, %c0_i32, %c0_i32_0 : i32, i32, i32
  }
}

module attributes {stable_mosaic.version = 11 : i64} {
  func.func @_k2_spectral_fwd(%arg0: i32, %arg1: memref<1x2x256xf32, #tpu.memory_space<vmem>>, %arg2: memref<2x1xf32, #tpu.memory_space<vmem>>, %arg3: memref<2x1xf32, #tpu.memory_space<vmem>>, %arg4: memref<256x144xf32, #tpu.memory_space<vmem>>, %arg5: memref<256x144xf32, #tpu.memory_space<vmem>>, %arg6: memref<4x2xf32, #tpu.memory_space<vmem>>, %arg7: memref<4x2xf32, #tpu.memory_space<vmem>>, %arg8: memref<1x4x144xf32, #tpu.memory_space<vmem>>, %arg9: memref<1x4x1xf32, #tpu.memory_space<vmem>>, %arg10: memref<1x4x1xf32, #tpu.memory_space<vmem>>) attributes {dimension_semantics = [#tpu.dimension_semantics<parallel>], iteration_bounds = array<i64: 2>, scalar_prefetch = 0 : i64, scratch_operands = 0 : i64, tpu.core_type = #tpu.core_type<tc>, window_params = [{transform_indices = @transform_0, window_bounds = array<i64: 1, 2, 256>}, {pipeline_mode = #tpu.pipeline_mode<synchronous>, transform_indices = @transform_1, window_bounds = array<i64: 2, 1>}, {pipeline_mode = #tpu.pipeline_mode<synchronous>, transform_indices = @transform_2, window_bounds = array<i64: 2, 1>}, {pipeline_mode = #tpu.pipeline_mode<synchronous>, transform_indices = @transform_3, window_bounds = array<i64: 256, 144>}, {pipeline_mode = #tpu.pipeline_mode<synchronous>, transform_indices = @transform_4, window_bounds = array<i64: 256, 144>}, {pipeline_mode = #tpu.pipeline_mode<synchronous>, transform_indices = @transform_5, window_bounds = array<i64: 4, 2>}, {pipeline_mode = #tpu.pipeline_mode<synchronous>, transform_indices = @transform_6, window_bounds = array<i64: 4, 2>}, {transform_indices = @transform_7, window_bounds = array<i64: 1, 4, 144>}, {transform_indices = @transform_8, window_bounds = array<i64: 1, 4, 1>}, {transform_indices = @transform_9, window_bounds = array<i64: 1, 4, 1>}]} {
    %c0 = arith.constant 0 : index
    %c0_0 = arith.constant 0 : index
    %c0_1 = arith.constant 0 : index
    %0 = vector.load %arg1[%c0, %c0_0, %c0_1] : memref<1x2x256xf32, #tpu.memory_space<vmem>>, vector<1x2x256xf32>
    %1 = vector.shape_cast %0 : vector<1x2x256xf32> to vector<2x256xf32>
    %c0_2 = arith.constant 0 : index
    %c0_3 = arith.constant 0 : index
    %2 = vector.load %arg2[%c0_2, %c0_3] : memref<2x1xf32, #tpu.memory_space<vmem>>, vector<2x1xf32>
    %3 = vector.broadcast %2 : vector<2x1xf32> to vector<2x256xf32>
    %4 = arith.mulf %1, %3 : vector<2x256xf32>
    %c0_4 = arith.constant 0 : index
    %c0_5 = arith.constant 0 : index
    %5 = vector.load %arg3[%c0_4, %c0_5] : memref<2x1xf32, #tpu.memory_space<vmem>>, vector<2x1xf32>
    %6 = vector.broadcast %5 : vector<2x1xf32> to vector<2x256xf32>
    %7 = arith.addf %4, %6 : vector<2x256xf32>
    %cst = arith.constant 0.000000e+00 : f32
    %8 = vector.broadcast %cst : f32 to vector<2x256xf32>
    %9 = arith.maximumf %7, %8 : vector<2x256xf32>
    %c0_6 = arith.constant 0 : index
    %c0_7 = arith.constant 0 : index
    %10 = vector.load %arg4[%c0_6, %c0_7] : memref<256x144xf32, #tpu.memory_space<vmem>>, vector<256x144xf32>
    %cst_8 = arith.constant dense<0.000000e+00> : vector<2x144xf32>
    %11 = tpu.matmul %9, %10, %cst_8 {dimension_numbers = #tpu.dot_dimension_numbers<[1], [0], [0], [1], [0, 0, 1, 1], [], []>} : vector<2x256xf32>, vector<256x144xf32>, vector<2x144xf32> -> vector<2x144xf32>
    %c0_9 = arith.constant 0 : index
    %c0_10 = arith.constant 0 : index
    %12 = vector.load %arg5[%c0_9, %c0_10] : memref<256x144xf32, #tpu.memory_space<vmem>>, vector<256x144xf32>
    %cst_11 = arith.constant dense<0.000000e+00> : vector<2x144xf32>
    %13 = tpu.matmul %9, %12, %cst_11 {dimension_numbers = #tpu.dot_dimension_numbers<[1], [0], [0], [1], [0, 0, 1, 1], [], []>} : vector<2x256xf32>, vector<256x144xf32>, vector<2x144xf32> -> vector<2x144xf32>
    %c0_12 = arith.constant 0 : index
    %c0_13 = arith.constant 0 : index
    %14 = vector.load %arg6[%c0_12, %c0_13] : memref<4x2xf32, #tpu.memory_space<vmem>>, vector<4x2xf32>
    %cst_14 = arith.constant dense<0.000000e+00> : vector<4x144xf32>
    %15 = tpu.matmul %14, %11, %cst_14 {dimension_numbers = #tpu.dot_dimension_numbers<[1], [0], [0], [1], [0, 0, 1, 1], [], []>} : vector<4x2xf32>, vector<2x144xf32>, vector<4x144xf32> -> vector<4x144xf32>
    %c0_15 = arith.constant 0 : index
    %c0_16 = arith.constant 0 : index
    %16 = vector.load %arg7[%c0_15, %c0_16] : memref<4x2xf32, #tpu.memory_space<vmem>>, vector<4x2xf32>
    %cst_17 = arith.constant dense<0.000000e+00> : vector<4x144xf32>
    %17 = tpu.matmul %16, %13, %cst_17 {dimension_numbers = #tpu.dot_dimension_numbers<[1], [0], [0], [1], [0, 0, 1, 1], [], []>} : vector<4x2xf32>, vector<2x144xf32>, vector<4x144xf32> -> vector<4x144xf32>
    %18 = arith.addf %15, %17 : vector<4x144xf32>
    %c0_18 = arith.constant 0 : index
    %c0_19 = arith.constant 0 : index
    %c0_20 = arith.constant 0 : index
    %19 = vector.load %arg8[%c0_18, %c0_19, %c0_20] : memref<1x4x144xf32, #tpu.memory_space<vmem>>, vector<1x4x144xf32>
    %20 = vector.shape_cast %19 : vector<1x4x144xf32> to vector<4x144xf32>
    %21 = vector.shape_cast %18 : vector<4x144xf32> to vector<1x4x144xf32>
    tpu.vector_store %arg8[%c0_18, %c0_19, %c0_20], %21 {strides = array<i32>} : memref<1x4x144xf32, #tpu.memory_space<vmem>>, vector<1x4x144xf32>,
    %cst_21 = arith.constant dense<0.000000e+00> : vector<4xf32>
    %22 = vector.multi_reduction <add>, %18, %cst_21 [1] : vector<4x144xf32> to vector<4xf32>
    %23 = vector.shape_cast %22 : vector<4xf32> to vector<4x1xf32>
    %c0_22 = arith.constant 0 : index
    %c0_23 = arith.constant 0 : index
    %c0_24 = arith.constant 0 : index
    %24 = vector.load %arg9[%c0_22, %c0_23, %c0_24] : memref<1x4x1xf32, #tpu.memory_space<vmem>>, vector<1x4x1xf32>
    %25 = vector.shape_cast %24 : vector<1x4x1xf32> to vector<4x1xf32>
    %26 = vector.shape_cast %23 : vector<4x1xf32> to vector<1x4x1xf32>
    tpu.vector_store %arg9[%c0_22, %c0_23, %c0_24], %26 {strides = array<i32>} : memref<1x4x1xf32, #tpu.memory_space<vmem>>, vector<1x4x1xf32>,
    %27 = arith.mulf %18, %18 : vector<4x144xf32>
    %cst_25 = arith.constant dense<0.000000e+00> : vector<4xf32>
    %28 = vector.multi_reduction <add>, %27, %cst_25 [1] : vector<4x144xf32> to vector<4xf32>
    %29 = vector.shape_cast %28 : vector<4xf32> to vector<4x1xf32>
    %c0_26 = arith.constant 0 : index
    %c0_27 = arith.constant 0 : index
    %c0_28 = arith.constant 0 : index
    %30 = vector.load %arg10[%c0_26, %c0_27, %c0_28] : memref<1x4x1xf32, #tpu.memory_space<vmem>>, vector<1x4x1xf32>
    %31 = vector.shape_cast %30 : vector<1x4x1xf32> to vector<4x1xf32>
    %32 = vector.shape_cast %29 : vector<4x1xf32> to vector<1x4x1xf32>
    tpu.vector_store %arg10[%c0_26, %c0_27, %c0_28], %32 {strides = array<i32>} : memref<1x4x1xf32, #tpu.memory_space<vmem>>, vector<1x4x1xf32>,
    return
  }
  func.func @transform_0(%arg0: i32) -> (i32, i32, i32) {
    %c0_i32 = arith.constant 0 : i32
    %c0_i32_0 = arith.constant 0 : i32
    %c0_i32_1 = arith.constant 0 : i32
    return %arg0, %c0_i32, %c0_i32_0 : i32, i32, i32
  }
  func.func @transform_1(%arg0: i32) -> (i32, i32) {
    %c0_i32 = arith.constant 0 : i32
    %c0_i32_0 = arith.constant 0 : i32
    %c0_i32_1 = arith.constant 0 : i32
    return %c0_i32, %c0_i32_0 : i32, i32
  }
  func.func @transform_2(%arg0: i32) -> (i32, i32) {
    %c0_i32 = arith.constant 0 : i32
    %c0_i32_0 = arith.constant 0 : i32
    %c0_i32_1 = arith.constant 0 : i32
    return %c0_i32, %c0_i32_0 : i32, i32
  }
  func.func @transform_3(%arg0: i32) -> (i32, i32) {
    %c0_i32 = arith.constant 0 : i32
    %c0_i32_0 = arith.constant 0 : i32
    %c0_i32_1 = arith.constant 0 : i32
    return %c0_i32, %c0_i32_0 : i32, i32
  }
  func.func @transform_4(%arg0: i32) -> (i32, i32) {
    %c0_i32 = arith.constant 0 : i32
    %c0_i32_0 = arith.constant 0 : i32
    %c0_i32_1 = arith.constant 0 : i32
    return %c0_i32, %c0_i32_0 : i32, i32
  }
  func.func @transform_5(%arg0: i32) -> (i32, i32) {
    %c0_i32 = arith.constant 0 : i32
    %c0_i32_0 = arith.constant 0 : i32
    %c0_i32_1 = arith.constant 0 : i32
    return %c0_i32, %c0_i32_0 : i32, i32
  }
  func.func @transform_6(%arg0: i32) -> (i32, i32) {
    %c0_i32 = arith.constant 0 : i32
    %c0_i32_0 = arith.constant 0 : i32
    %c0_i32_1 = arith.constant 0 : i32
    return %c0_i32, %c0_i32_0 : i32, i32
  }
  func.func @transform_7(%arg0: i32) -> (i32, i32, i32) {
    %c0_i32 = arith.constant 0 : i32
    %c0_i32_0 = arith.constant 0 : i32
    %c0_i32_1 = arith.constant 0 : i32
    return %arg0, %c0_i32, %c0_i32_0 : i32, i32, i32
  }
  func.func @transform_8(%arg0: i32) -> (i32, i32, i32) {
    %c0_i32 = arith.constant 0 : i32
    %c0_i32_0 = arith.constant 0 : i32
    %c0_i32_1 = arith.constant 0 : i32
    return %arg0, %c0_i32, %c0_i32_0 : i32, i32, i32
  }
  func.func @transform_9(%arg0: i32) -> (i32, i32, i32) {
    %c0_i32 = arith.constant 0 : i32
    %c0_i32_0 = arith.constant 0 : i32
    %c0_i32_1 = arith.constant 0 : i32
    return %arg0, %c0_i32, %c0_i32_0 : i32, i32, i32
  }
}

module attributes {stable_mosaic.version = 11 : i64} {
  func.func @_k3_spectral_out(%arg0: i32, %arg1: memref<1x8x256xf32, #tpu.memory_space<vmem>>, %arg2: memref<1x2x256xf32, #tpu.memory_space<vmem>>, %arg3: memref<2x1xf32, #tpu.memory_space<vmem>>, %arg4: memref<2x1xf32, #tpu.memory_space<vmem>>, %arg5: memref<1x4x144xf32, #tpu.memory_space<vmem>>, %arg6: memref<4x1xf32, #tpu.memory_space<vmem>>, %arg7: memref<4x1xf32, #tpu.memory_space<vmem>>, %arg8: memref<144x256xf32, #tpu.memory_space<vmem>>, %arg9: memref<144x256xf32, #tpu.memory_space<vmem>>, %arg10: memref<4x2xf32, #tpu.memory_space<vmem>>, %arg11: memref<4x4xf32, #tpu.memory_space<vmem>>, %arg12: memref<1x4x256xf32, #tpu.memory_space<vmem>>) attributes {dimension_semantics = [#tpu.dimension_semantics<parallel>], iteration_bounds = array<i64: 2>, scalar_prefetch = 0 : i64, scratch_operands = 0 : i64, tpu.core_type = #tpu.core_type<tc>, window_params = [{transform_indices = @transform_0, window_bounds = array<i64: 1, 8, 256>}, {transform_indices = @transform_1, window_bounds = array<i64: 1, 2, 256>}, {pipeline_mode = #tpu.pipeline_mode<synchronous>, transform_indices = @transform_2, window_bounds = array<i64: 2, 1>}, {pipeline_mode = #tpu.pipeline_mode<synchronous>, transform_indices = @transform_3, window_bounds = array<i64: 2, 1>}, {transform_indices = @transform_4, window_bounds = array<i64: 1, 4, 144>}, {pipeline_mode = #tpu.pipeline_mode<synchronous>, transform_indices = @transform_5, window_bounds = array<i64: 4, 1>}, {pipeline_mode = #tpu.pipeline_mode<synchronous>, transform_indices = @transform_6, window_bounds = array<i64: 4, 1>}, {pipeline_mode = #tpu.pipeline_mode<synchronous>, transform_indices = @transform_7, window_bounds = array<i64: 144, 256>}, {pipeline_mode = #tpu.pipeline_mode<synchronous>, transform_indices = @transform_8, window_bounds = array<i64: 144, 256>}, {pipeline_mode = #tpu.pipeline_mode<synchronous>, transform_indices = @transform_9, window_bounds = array<i64: 4, 2>}, {pipeline_mode = #tpu.pipeline_mode<synchronous>, transform_indices = @transform_10, window_bounds = array<i64: 4, 4>}, {transform_indices = @transform_11, window_bounds = array<i64: 1, 4, 256>}]} {
    %c0 = arith.constant 0 : index
    %c0_0 = arith.constant 0 : index
    %c0_1 = arith.constant 0 : index
    %0 = vector.load %arg1[%c0, %c0_0, %c0_1] : memref<1x8x256xf32, #tpu.memory_space<vmem>>, vector<1x8x256xf32>
    %1 = vector.shape_cast %0 : vector<1x8x256xf32> to vector<8x256xf32>
    %2 = vector.extract_strided_slice %1 {offsets = [0, 0], sizes = [4, 256], strides = [1, 1]} : vector<8x256xf32> to vector<4x256xf32>
    %c0_2 = arith.constant 0 : index
    %c0_3 = arith.constant 0 : index
    %c0_4 = arith.constant 0 : index
    %3 = vector.load %arg2[%c0_2, %c0_3, %c0_4] : memref<1x2x256xf32, #tpu.memory_space<vmem>>, vector<1x2x256xf32>
    %4 = vector.shape_cast %3 : vector<1x2x256xf32> to vector<2x256xf32>
    %c0_5 = arith.constant 0 : index
    %c0_6 = arith.constant 0 : index
    %5 = vector.load %arg3[%c0_5, %c0_6] : memref<2x1xf32, #tpu.memory_space<vmem>>, vector<2x1xf32>
    %6 = vector.broadcast %5 : vector<2x1xf32> to vector<2x256xf32>
    %7 = arith.mulf %4, %6 : vector<2x256xf32>
    %c0_7 = arith.constant 0 : index
    %c0_8 = arith.constant 0 : index
    %8 = vector.load %arg4[%c0_7, %c0_8] : memref<2x1xf32, #tpu.memory_space<vmem>>, vector<2x1xf32>
    %9 = vector.broadcast %8 : vector<2x1xf32> to vector<2x256xf32>
    %10 = arith.addf %7, %9 : vector<2x256xf32>
    %cst = arith.constant 0.000000e+00 : f32
    %11 = vector.broadcast %cst : f32 to vector<2x256xf32>
    %12 = arith.maximumf %10, %11 : vector<2x256xf32>
    %c0_9 = arith.constant 0 : index
    %c0_10 = arith.constant 0 : index
    %c0_11 = arith.constant 0 : index
    %13 = vector.load %arg5[%c0_9, %c0_10, %c0_11] : memref<1x4x144xf32, #tpu.memory_space<vmem>>, vector<1x4x144xf32>
    %14 = vector.shape_cast %13 : vector<1x4x144xf32> to vector<4x144xf32>
    %c0_12 = arith.constant 0 : index
    %c0_13 = arith.constant 0 : index
    %15 = vector.load %arg6[%c0_12, %c0_13] : memref<4x1xf32, #tpu.memory_space<vmem>>, vector<4x1xf32>
    %16 = vector.broadcast %15 : vector<4x1xf32> to vector<4x144xf32>
    %17 = arith.mulf %14, %16 : vector<4x144xf32>
    %c0_14 = arith.constant 0 : index
    %c0_15 = arith.constant 0 : index
    %18 = vector.load %arg7[%c0_14, %c0_15] : memref<4x1xf32, #tpu.memory_space<vmem>>, vector<4x1xf32>
    %19 = vector.broadcast %18 : vector<4x1xf32> to vector<4x144xf32>
    %20 = arith.addf %17, %19 : vector<4x144xf32>
    %cst_16 = arith.constant 0.000000e+00 : f32
    %21 = vector.broadcast %cst_16 : f32 to vector<4x144xf32>
    %22 = arith.maximumf %20, %21 : vector<4x144xf32>
    %23 = vector.extract_strided_slice %22 {offsets = [0, 0], sizes = [2, 144], strides = [1, 1]} : vector<4x144xf32> to vector<2x144xf32>
    %24 = vector.extract_strided_slice %22 {offsets = [2, 0], sizes = [2, 144], strides = [1, 1]} : vector<4x144xf32> to vector<2x144xf32>
    %c0_17 = arith.constant 0 : index
    %c0_18 = arith.constant 0 : index
    %25 = vector.load %arg8[%c0_17, %c0_18] : memref<144x256xf32, #tpu.memory_space<vmem>>, vector<144x256xf32>
    %cst_19 = arith.constant dense<0.000000e+00> : vector<2x256xf32>
    %26 = tpu.matmul %23, %25, %cst_19 {dimension_numbers = #tpu.dot_dimension_numbers<[1], [0], [0], [1], [0, 0, 1, 1], [], []>} : vector<2x144xf32>, vector<144x256xf32>, vector<2x256xf32> -> vector<2x256xf32>
    %c0_20 = arith.constant 0 : index
    %c0_21 = arith.constant 0 : index
    %27 = vector.load %arg9[%c0_20, %c0_21] : memref<144x256xf32, #tpu.memory_space<vmem>>, vector<144x256xf32>
    %cst_22 = arith.constant dense<0.000000e+00> : vector<2x256xf32>
    %28 = tpu.matmul %24, %27, %cst_22 {dimension_numbers = #tpu.dot_dimension_numbers<[1], [0], [0], [1], [0, 0, 1, 1], [], []>} : vector<2x144xf32>, vector<144x256xf32>, vector<2x256xf32> -> vector<2x256xf32>
    %29 = arith.addf %26, %28 : vector<2x256xf32>
    %c0_23 = arith.constant 0 : index
    %c0_24 = arith.constant 0 : index
    %30 = vector.load %arg10[%c0_23, %c0_24] : memref<4x2xf32, #tpu.memory_space<vmem>>, vector<4x2xf32>
    %31 = arith.addf %12, %29 : vector<2x256xf32>
    %cst_25 = arith.constant dense<0.000000e+00> : vector<4x256xf32>
    %32 = tpu.matmul %30, %31, %cst_25 {dimension_numbers = #tpu.dot_dimension_numbers<[1], [0], [0], [1], [0, 0, 1, 1], [], []>} : vector<4x2xf32>, vector<2x256xf32>, vector<4x256xf32> -> vector<4x256xf32>
    %c0_26 = arith.constant 0 : index
    %c0_27 = arith.constant 0 : index
    %33 = vector.load %arg11[%c0_26, %c0_27] : memref<4x4xf32, #tpu.memory_space<vmem>>, vector<4x4xf32>
    %cst_28 = arith.constant dense<0.000000e+00> : vector<4x256xf32>
    %34 = tpu.matmul %33, %2, %cst_28 {dimension_numbers = #tpu.dot_dimension_numbers<[1], [0], [0], [1], [0, 0, 1, 1], [], []>} : vector<4x4xf32>, vector<4x256xf32>, vector<4x256xf32> -> vector<4x256xf32>
    %35 = arith.addf %32, %34 : vector<4x256xf32>
    %c0_29 = arith.constant 0 : index
    %c0_30 = arith.constant 0 : index
    %c0_31 = arith.constant 0 : index
    %36 = vector.load %arg12[%c0_29, %c0_30, %c0_31] : memref<1x4x256xf32, #tpu.memory_space<vmem>>, vector<1x4x256xf32>
    %37 = vector.shape_cast %36 : vector<1x4x256xf32> to vector<4x256xf32>
    %38 = vector.shape_cast %35 : vector<4x256xf32> to vector<1x4x256xf32>
    tpu.vector_store %arg12[%c0_29, %c0_30, %c0_31], %38 {strides = array<i32>} : memref<1x4x256xf32, #tpu.memory_space<vmem>>, vector<1x4x256xf32>,
    return
  }
  func.func @transform_0(%arg0: i32) -> (i32, i32, i32) {
    %c0_i32 = arith.constant 0 : i32
    %c0_i32_0 = arith.constant 0 : i32
    %c0_i32_1 = arith.constant 0 : i32
    return %arg0, %c0_i32, %c0_i32_0 : i32, i32, i32
  }
  func.func @transform_1(%arg0: i32) -> (i32, i32, i32) {
    %c0_i32 = arith.constant 0 : i32
    %c0_i32_0 = arith.constant 0 : i32
    %c0_i32_1 = arith.constant 0 : i32
    return %arg0, %c0_i32, %c0_i32_0 : i32, i32, i32
  }
  func.func @transform_2(%arg0: i32) -> (i32, i32) {
    %c0_i32 = arith.constant 0 : i32
    %c0_i32_0 = arith.constant 0 : i32
    %c0_i32_1 = arith.constant 0 : i32
    return %c0_i32, %c0_i32_0 : i32, i32
  }
  func.func @transform_3(%arg0: i32) -> (i32, i32) {
    %c0_i32 = arith.constant 0 : i32
    %c0_i32_0 = arith.constant 0 : i32
    %c0_i32_1 = arith.constant 0 : i32
    return %c0_i32, %c0_i32_0 : i32, i32
  }
  func.func @transform_4(%arg0: i32) -> (i32, i32, i32) {
    %c0_i32 = arith.constant 0 : i32
    %c0_i32_0 = arith.constant 0 : i32
    %c0_i32_1 = arith.constant 0 : i32
    return %arg0, %c0_i32, %c0_i32_0 : i32, i32, i32
  }
  func.func @transform_5(%arg0: i32) -> (i32, i32) {
    %c0_i32 = arith.constant 0 : i32
    %c0_i32_0 = arith.constant 0 : i32
    %c0_i32_1 = arith.constant 0 : i32
    return %c0_i32, %c0_i32_0 : i32, i32
  }
  func.func @transform_6(%arg0: i32) -> (i32, i32) {
    %c0_i32 = arith.constant 0 : i32
    %c0_i32_0 = arith.constant 0 : i32
    %c0_i32_1 = arith.constant 0 : i32
    return %c0_i32, %c0_i32_0 : i32, i32
  }
  func.func @transform_7(%arg0: i32) -> (i32, i32) {
    %c0_i32 = arith.constant 0 : i32
    %c0_i32_0 = arith.constant 0 : i32
    %c0_i32_1 = arith.constant 0 : i32
    return %c0_i32, %c0_i32_0 : i32, i32
  }
  func.func @transform_8(%arg0: i32) -> (i32, i32) {
    %c0_i32 = arith.constant 0 : i32
    %c0_i32_0 = arith.constant 0 : i32
    %c0_i32_1 = arith.constant 0 : i32
    return %c0_i32, %c0_i32_0 : i32, i32
  }
  func.func @transform_9(%arg0: i32) -> (i32, i32) {
    %c0_i32 = arith.constant 0 : i32
    %c0_i32_0 = arith.constant 0 : i32
    %c0_i32_1 = arith.constant 0 : i32
    return %c0_i32, %c0_i32_0 : i32, i32
  }
  func.func @transform_10(%arg0: i32) -> (i32, i32) {
    %c0_i32 = arith.constant 0 : i32
    %c0_i32_0 = arith.constant 0 : i32
    %c0_i32_1 = arith.constant 0 : i32
    return %c0_i32, %c0_i32_0 : i32, i32
  }
  func.func @transform_11(%arg0: i32) -> (i32, i32, i32) {
    %c0_i32 = arith.constant 0 : i32
    %c0_i32_0 = arith.constant 0 : i32
    %c0_i32_1 = arith.constant 0 : i32
    return %arg0, %c0_i32, %c0_i32_0 : i32, i32, i32
  }
}

</mosaic_0001>

<llo_original>
// kernel: ffc_forward.3
$region0: #{ffc_forward.3}
  #allocation0 [shape = 'u32[]', space=smem, size = 0x4, offset = 0x4, fixed_abs, tag = 'smem constant byte address 0x4 - core index']
  #allocation1 [shape = 'u32[144,128]{1,0:T(1,128)}', space=vmem, size = 0x12000, scoped, tag = 'internal scratch']
  %s0 = inlined_call_operand.vmem [shape: f32[2,8,256], index: 0, kind: input, shape index: {}]
  %s1 = inlined_call_operand.vmem [shape: f32[4,4], index: 1, kind: input, shape index: {}]
  %s2 = inlined_call_operand.vmem [shape: f32[4,4], index: 2, kind: input, shape index: {}]
  %s3 = inlined_call_operand.vmem [shape: f32[2,4], index: 3, kind: input, shape index: {}]
  %s4 = inlined_call_operand.vmem [shape: f32[2,4,256], index: 4, kind: output, shape index: {0}]
  %s5 = inlined_call_operand.vmem [shape: f32[2,2,256], index: 5, kind: output, shape index: {1}]
  %s6 = inlined_call_operand.vmem [shape: f32[2,2,1], index: 6, kind: output, shape index: {2}]
  %s7 = inlined_call_operand.vmem [shape: f32[2,2,1], index: 7, kind: output, shape index: {3}]
  %8 = xla_tuple %s4, %s5, %s6, %s7
  %s9 = sld [smem:[#allocation0]]
  $region73: #{ffc_forward.3} parent=0
    _
  %s11 = ssub.s32 1, %s9
  %s12 = scalar_select 0, %s11, %s9
  loop: start=0, step=1, limit=4
  $region2: #{ffc_forward.3} parent=0 // loop_pre_header
    _
  $region3: #{ffc_forward.3} parent=0 // loop_header
    %s14 = sphi 0, %s18
    %p15 = scmp.ge.s32.totalorder %s14, 4
    %s24 = sphi 0, %s26
    %s27 = sphi 0, %s24
    %s28 = sphi 0, %s27
    %s44 = sphi 0, %s28
    %s48 = sphi 0, %s48
    %s50 = sphi 0, %s48
    %s51 = sphi 0, %s50
    %s65 = sphi 0, %s51
    %s69 = sphi 0, %s69
    %s71 = sphi 0, %s69
    %s72 = sphi 0, %s71
    %s86 = sphi 0, %s72
    %s90 = sphi 0, %s90
    %s92 = sphi 0, %s90
    %s93 = sphi 0, %s92
    %s107 = sphi 0, %s93
    %s113 = sphi 0, %s115
    %s116 = sphi 0, %s113
    %s117 = sphi 0, %s116
    %s133 = sphi 0, %s117
    %s139 = sphi 0, %s141
    %s142 = sphi 0, %s139
    %s143 = sphi 0, %s142
    %s159 = sphi 0, %s143
    %s165 = sphi 0, %s167
    %s168 = sphi 0, %s165
    %s169 = sphi 0, %s168
    %s185 = sphi 0, %s169
    %s191 = sphi 0, %s193
    %s194 = sphi 0, %s191
    %s195 = sphi 0, %s194
    %s211 = sphi 0, %s195
  $region4: #{ffc_forward.3} parent=0 // loop_header_branch
    %17 = sbr.rel (%p15) target = $region8
  $region5: #{ffc_forward.3} parent=0 // loop_body
    %s19 = ssub.s32 %s14, 1
    %s20 = ssub.s32 %s14, 2
    %s21 = sadd.s32 %s14, 1
    %s22 = ssub.s32 %s14, %s21
    %p23 = scmp.eq.s32.totalorder %s22, 0
    %s25 = sadd.s32 %s24, 1
    %s26 = scalar_select %p23, %s24, %s25
    %p29 = pneg %p23
    %p30 = scmp.eq.s32.totalorder %s14, 1
    %p31 = por %p29, %p30
    %p32 = scmp.ne.s32.totalorder %s24, %s27
    %p33 = scmp.eq.s32.totalorder %s14, 0
    %p34 = por %p32, %p33
    %p35 = scmp.ne.s32.totalorder %s24, %s27
    %p36 = scmp.eq.s32.totalorder %s19, 1
    %p37 = por %p35, %p36
    %p38 = scmp.ne.s32.totalorder %s27, %s28
    %p39 = scmp.eq.s32.totalorder %s19, 0
    %p40 = por %p38, %p39
    %p41 = scmp.ne.s32.totalorder %s27, %s28
    %p42 = scmp.eq.s32.totalorder %s20, 1
    %p43 = por %p41, %p42
    %p45 = scmp.ne.s32.totalorder %s28, %s44
    %p46 = scmp.eq.s32.totalorder %s20, 0
    %p47 = por %p45, %p46
    %s49 = sadd.s32 %s48, 1
    %p52 = scmp.eq.s32.totalorder %s14, 1
    %p53 = scmp.ne.s32.totalorder %s48, %s50
    %p54 = scmp.eq.s32.totalorder %s14, 0
    %p55 = por %p53, %p54
    %p56 = scmp.ne.s32.totalorder %s48, %s50
    %p57 = scmp.eq.s32.totalorder %s19, 1
    %p58 = por %p56, %p57
    %p59 = scmp.ne.s32.totalorder %s50, %s51
    %p60 = scmp.eq.s32.totalorder %s19, 0
    %p61 = por %p59, %p60
    %p62 = scmp.ne.s32.totalorder %s50, %s51
    %p63 = scmp.eq.s32.totalorder %s20, 1
    %p64 = por %p62, %p63
    %p66 = scmp.ne.s32.totalorder %s51, %s65
    %p67 = scmp.eq.s32.totalorder %s20, 0
    %p68 = por %p66, %p67
    %s70 = sadd.s32 %s69, 1
    %p73 = scmp.eq.s32.totalorder %s14, 1
    %p74 = scmp.ne.s32.totalorder %s69, %s71
    %p75 = scmp.eq.s32.totalorder %s14, 0
    %p76 = por %p74, %p75
    %p77 = scmp.ne.s32.totalorder %s69, %s71
    %p78 = scmp.eq.s32.totalorder %s19, 1
    %p79 = por %p77, %p78
    %p80 = scmp.ne.s32.totalorder %s71, %s72
    %p81 = scmp.eq.s32.totalorder %s19, 0
    %p82 = por %p80, %p81
    %p83 = scmp.ne.s32.totalorder %s71, %s72
    %p84 = scmp.eq.s32.totalorder %s20, 1
    %p85 = por %p83, %p84
    %p87 = scmp.ne.s32.totalorder %s72, %s86
    %p88 = scmp.eq.s32.totalorder %s20, 0
    %p89 = por %p87, %p88
    %s91 = sadd.s32 %s90, 1
    %p94 = scmp.eq.s32.totalorder %s14, 1
    %p95 = scmp.ne.s32.totalorder %s90, %s92
    %p96 = scmp.eq.s32.totalorder %s14, 0
    %p97 = por %p95, %p96
    %p98 = scmp.ne.s32.totalorder %s90, %s92
    %p99 = scmp.eq.s32.totalorder %s19, 1
    %p100 = por %p98, %p99
    %p101 = scmp.ne.s32.totalorder %s92, %s93
    %p102 = scmp.eq.s32.totalorder %s19, 0
    %p103 = por %p101, %p102
    %p104 = scmp.ne.s32.totalorder %s92, %s93
    %p105 = scmp.eq.s32.totalorder %s20, 1
    %p106 = por %p104, %p105
    %p108 = scmp.ne.s32.totalorder %s93, %s107
    %p109 = scmp.eq.s32.totalorder %s20, 0
    %p110 = por %p108, %p109
    %s111 = ssub.s32 %s14, %s21
    %p112 = scmp.eq.s32.totalorder %s111, 0
    %s114 = sadd.s32 %s113, 1
    %s115 = scalar_select %p112, %s113, %s114
    %p118 = pneg %p112
    %p119 = scmp.eq.s32.totalorder %s14, 1
    %p120 = por %p118, %p119
    %p121 = scmp.ne.s32.totalorder %s113, %s116
    %p122 = scmp.eq.s32.totalorder %s14, 0
    %p123 = por %p121, %p122
    %p124 = scmp.ne.s32.totalorder %s113, %s116
    %p125 = scmp.eq.s32.totalorder %s19, 1
    %p126 = por %p124, %p125
    %p127 = scmp.ne.s32.totalorder %s116, %s117
    %p128 = scmp.eq.s32.totalorder %s19, 0
    %p129 = por %p127, %p128
    %p130 = scmp.ne.s32.totalorder %s116, %s117
    %p131 = scmp.eq.s32.totalorder %s20, 1
    %p132 = por %p130, %p131
    %p134 = scmp.ne.s32.totalorder %s117, %s133
    %p135 = scmp.eq.s32.totalorder %s20, 0
    %p136 = por %p134, %p135
    %s137 = ssub.s32 %s14, %s21
    %p138 = scmp.eq.s32.totalorder %s137, 0
    %s140 = sadd.s32 %s139, 1
    %s141 = scalar_select %p138, %s139, %s140
    %p144 = pneg %p138
    %p145 = scmp.eq.s32.totalorder %s14, 1
    %p146 = por %p144, %p145
    %p147 = scmp.ne.s32.totalorder %s139, %s142
    %p148 = scmp.eq.s32.totalorder %s14, 0
    %p149 = por %p147, %p148
    %p150 = scmp.ne.s32.totalorder %s139, %s142
    %p151 = scmp.eq.s32.totalorder %s19, 1
    %p152 = por %p150, %p151
    %p153 = scmp.ne.s32.totalorder %s142, %s143
    %p154 = scmp.eq.s32.totalorder %s19, 0
    %p155 = por %p153, %p154
    %p156 = scmp.ne.s32.totalorder %s142, %s143
    %p157 = scmp.eq.s32.totalorder %s20, 1
    %p158 = por %p156, %p157
    %p160 = scmp.ne.s32.totalorder %s143, %s159
    %p161 = scmp.eq.s32.totalorder %s20, 0
    %p162 = por %p160, %p161
    %s163 = ssub.s32 %s14, %s21
    %p164 = scmp.eq.s32.totalorder %s163, 0
    %s166 = sadd.s32 %s165, 1
    %s167 = scalar_select %p164, %s165, %s166
    %p170 = pneg %p164
    %p171 = scmp.eq.s32.totalorder %s14, 1
    %p172 = por %p170, %p171
    %p173 = scmp.ne.s32.totalorder %s165, %s168
    %p174 = scmp.eq.s32.totalorder %s14, 0
    %p175 = por %p173, %p174
    %p176 = scmp.ne.s32.totalorder %s165, %s168
    %p177 = scmp.eq.s32.totalorder %s19, 1
    %p178 = por %p176, %p177
    %p179 = scmp.ne.s32.totalorder %s168, %s169
    %p180 = scmp.eq.s32.totalorder %s19, 0
    %p181 = por %p179, %p180
    %p182 = scmp.ne.s32.totalorder %s168, %s169
    %p183 = scmp.eq.s32.totalorder %s20, 1
    %p184 = por %p182, %p183
    %p186 = scmp.ne.s32.totalorder %s169, %s185
    %p187 = scmp.eq.s32.totalorder %s20, 0
    %p188 = por %p186, %p187
    %s189 = ssub.s32 %s14, %s21
    %p190 = scmp.eq.s32.totalorder %s189, 0
    %s192 = sadd.s32 %s191, 1
    %s193 = scalar_select %p190, %s191, %s192
    %p196 = pneg %p190
    %p197 = scmp.eq.s32.totalorder %s14, 1
    %p198 = por %p196, %p197
    %p199 = scmp.ne.s32.totalorder %s191, %s194
    %p200 = scmp.eq.s32.totalorder %s14, 0
    %p201 = por %p199, %p200
    %p202 = scmp.ne.s32.totalorder %s191, %s194
    %p203 = scmp.eq.s32.totalorder %s19, 1
    %p204 = por %p202, %p203
    %p205 = scmp.ne.s32.totalorder %s194, %s195
    %p206 = scmp.eq.s32.totalorder %s19, 0
    %p207 = por %p205, %p206
    %p208 = scmp.ne.s32.totalorder %s194, %s195
    %p209 = scmp.eq.s32.totalorder %s20, 1
    %p210 = por %p208, %p209
    %p212 = scmp.ne.s32.totalorder %s195, %s211
    %p213 = scmp.eq.s32.totalorder %s20, 0
    %p214 = por %p212, %p213
    %p215 = scmp.le.s32.totalorder 1, %s14
    %p216 = scmp.lt.s32.totalorder %s14, 3
    %p217 = pnand %p215, %p216
    %p218 = pneg %p217
    // Predicated region
    $region9: #{ffc_forward.3} parent=5 // pred_check
      _
    $region10: #{ffc_forward.3} parent=5 // pred_check_branch
      %220 = sbr.rel (%p217) target = $region12
    $region11: #{ffc_forward.3} parent=5 // pred_region
      %s221 = ssub.s32 %s14, 1
      // Predicated region
      $region13: #{ffc_forward.3} parent=11 // pred_check
        %p222 = pneg %p61
      $region14: #{ffc_forward.3} parent=11 // pred_check_branch
        %224 = sbr.rel (%p222) target = $region16
      $region15: #{ffc_forward.3} parent=11 // pred_region
        _
      $region16: #{ffc_forward.3} parent=11 // pred_fallthru
        _
      // Predicated region
      $region17: #{ffc_forward.3} parent=11 // pred_check
        %p225 = pneg %p82
      $region18: #{ffc_forward.3} parent=11 // pred_check_branch
        %227 = sbr.rel (%p225) target = $region20
      $region19: #{ffc_forward.3} parent=11 // pred_region
        _
      $region20: #{ffc_forward.3} parent=11 // pred_fallthru
        _
      // Predicated region
      $region21: #{ffc_forward.3} parent=11 // pred_check
        %p228 = pneg %p103
      $region22: #{ffc_forward.3} parent=11 // pred_check_branch
        %230 = sbr.rel (%p228) target = $region24
      $region23: #{ffc_forward.3} parent=11 // pred_region
        _
      $region24: #{ffc_forward.3} parent=11 // pred_fallthru
        _
    $region12: #{ffc_forward.3} parent=5 // pred_fallthru
      _
    %p231 = scmp.lt.s32.totalorder %s14, 2
    // Predicated region
    $region25: #{ffc_forward.3} parent=5 // pred_check
      %p232 = pneg %p231
    $region26: #{ffc_forward.3} parent=5 // pred_check_branch
      %234 = sbr.rel (%p232) target = $region28
    $region27: #{ffc_forward.3} parent=5 // pred_region
      // Predicated region
      $region29: #{ffc_forward.3} parent=27 // pred_check
        %p235 = pneg %p34
      $region30: #{ffc_forward.3} parent=27 // pred_check_branch
        %237 = sbr.rel (%p235) target = $region32
      $region31: #{ffc_forward.3} parent=27 // pred_region
        %p238 = scmp.lt.s32.totalorder %s14, 1
        %s239 = scalar_select %p238, %s14, 1
        %s240 = smul.addr %s239, 2
        %s241 = smul.addr %s240, 8
        %s242 = scalar_lea.vmem %s0, %s241
      $region32: #{ffc_forward.3} parent=27 // pred_fallthru
        _
    $region28: #{ffc_forward.3} parent=5 // pred_fallthru
      _
    %p243 = scmp.le.s32.totalorder 1, %s14
    %p244 = scmp.lt.s32.totalorder %s14, 3
    %p245 = pnand %p243, %p244
    %p246 = pneg %p245
    // Predicated region
    $region33: #{ffc_forward.3} parent=5 // pred_check
      _
    $region34: #{ffc_forward.3} parent=5 // pred_check_branch
      %248 = sbr.rel (%p245) target = $region36
    $region35: #{ffc_forward.3} parent=5 // pred_region
      %s249 = ssub.s32 %s14, 1
      %p250 = scmp.lt.s32.totalorder %s19, 1
      %s251 = scalar_select %p250, %s19, 1
      %s252 = smul.addr %s251, 2
      %s253 = smul.addr %s252, 8
      %s254 = scalar_lea.vmem %s0, %s253
      %p255 = pneg %p40
      %p256 = pneg %p37
      %p257 = pneg %p61
      %p258 = pneg %p58
      %p259 = pneg %p82
      %p260 = pneg %p79
      %p261 = pneg %p103
      %p262 = pneg %p100
      %p263 = pneg %p129
      %p264 = pneg %p126
      %p265 = scmp.lt.s32.totalorder %s19, 1
      %s266 = scalar_select %p265, %s19, 1
      %s267 = smul.addr %s266, 2
      %s268 = smul.addr %s267, 4
      %s269 = scalar_lea.vmem %s4, %s268
      %p270 = pneg %p155
      %p271 = pneg %p152
      %p272 = scmp.lt.s32.totalorder %s19, 1
      %s273 = scalar_select %p272, %s19, 1
      %s274 = smul.addr %s273, 2
      %s275 = smul.addr %s274, 2
      %s276 = scalar_lea.vmem %s5, %s275
      %p277 = pneg %p181
      %p278 = pneg %p178
      %p279 = scmp.lt.s32.totalorder %s19, 1
      %s280 = scalar_select %p279, %s19, 1
      %s281 = smul.addr %s280, 2
      %s282 = scalar_lea.vmem %s6, %s281
      %p283 = pneg %p207
      %p284 = pneg %p204
      %p285 = scmp.lt.s32.totalorder %s19, 1
      %s286 = scalar_select %p285, %s19, 1
      %s287 = smul.addr %s286, 2
      %s288 = scalar_lea.vmem %s7, %s287
      %p289 = scmp.lt.s32.totalorder %s19, 1
      %s290 = scalar_select %p289, %s19, 1
      %s291 = smul.addr %s290, 2
      %s292 = smul.addr %s291, 8
      %s293 = scalar_lea.vmem %s0, %s292
      %p294 = scmp.lt.s32.totalorder %s19, 1
      %s295 = scalar_select %p294, %s19, 1
      %s296 = smul.addr %s295, 2
      %s297 = smul.addr %s296, 4
      %s298 = scalar_lea.vmem %s4, %s297
      %p299 = scmp.lt.s32.totalorder %s19, 1
      %s300 = scalar_select %p299, %s19, 1
      %s301 = smul.addr %s300, 2
      %s302 = smul.addr %s301, 2
      %s303 = scalar_lea.vmem %s5, %s302
      %p304 = scmp.lt.s32.totalorder %s19, 1
      %s305 = scalar_select %p304, %s19, 1
      %s306 = smul.addr %s305, 2
      %s307 = scalar_lea.vmem %s6, %s306
      %p308 = scmp.lt.s32.totalorder %s19, 1
      %s309 = scalar_select %p308, %s19, 1
      %s310 = smul.addr %s309, 2
      %s311 = scalar_lea.vmem %s7, %s310
      %v312 = vld [vmem:[%s293] sm:$0xff]
      %v313 = vld [vmem:[%s293 + $0x8] sm:$0xff]
      %v314 = vld [vmem:[%s1] sm:$0xf]
      %v315 = vld [vmem:[%s2] sm:$0xf]
      %v318 = vrot.slane %v312, 4
      %v319 = vrot.slane %v313, 4
      %vm320 = vcmask 31744
      %v322 = vsel %vm320, %v315, 0
      %vm324 = vcmask 1043456
      %v325 = vsel %vm324, %v318, 0
      %v327 = vsel %vm324, %v319, 0
      %329 = vmatprep.subr.mxu0 %v327
      %330 = vmatpush1.msra.mxu0 %v325
      %331 = vmatprep.subr.mxu0 0.0
      %332 = vmatpush1.msra.mxu0 0.0
      %333 = vmatprep.subr.mxu0 0.0
      %334 = vmatpush1.msra.mxu0 0.0
      %335 = vmatprep.subr.mxu0 0.0
      %336 = vmatpush1.msra.mxu0 0.0
      %337 = vmatprep.subr.mxu0 0.0
      %338 = vmatpush1.msra.mxu0 0.0
      %339 = vmatprep.subr.mxu0 0.0
      %340 = vmatpush1.msra.mxu0 0.0
      %341 = vmatprep.subr.mxu0 0.0
      %342 = vmatpush1.msra.mxu0 0.0
      %343 = vmatprep.subr.mxu0 0.0
      %344 = vmatpush1.msra.mxu0 0.0
      %345 = vmatprep.subr.mxu0 0.0
      %346 = vmatpush1.msra.mxu0 0.0
      %347 = vmatprep.subr.mxu0 0.0
      %348 = vmatpush1.msra.mxu0 0.0
      %349 = vmatprep.subr.mxu0 0.0
      %350 = vmatpush1.msra.mxu0 0.0
      %351 = vmatprep.subr.mxu0 0.0
      %352 = vmatpush1.msra.mxu0 0.0
      %353 = vmatprep.subr.mxu0 0.0
      %354 = vmatpush1.msra.mxu0 0.0
      %355 = vmatprep.subr.mxu0 0.0
      %356 = vmatpush1.msra.mxu0 0.0
      %357 = vmatprep.subr.mxu0 0.0
      %358 = vmatpush1.msra.mxu0 0.0
      %359 = vmatprep.subr.mxu0 0.0
      %360 = vmatpush1.msra.mxu0 0.0
      %361 = vmatprep.subr.mxu0 0.0
      %362 = vmatpush1.msra.mxu0 0.0
      %363 = vmatprep.subr.mxu0 0.0
      %364 = vmatpush1.msra.mxu0 0.0
      %365 = vmatprep.subr.mxu0 0.0
      %366 = vmatpush1.msra.mxu0 0.0
      %367 = vmatprep.subr.mxu0 0.0
      %368 = vmatpush1.msra.mxu0 0.0
      %369 = vmatprep.subr.mxu0 0.0
      %370 = vmatpush1.msra.mxu0 0.0
      %371 = vmatprep.subr.mxu0 0.0
      %372 = vmatpush1.msra.mxu0 0.0
      %373 = vmatprep.subr.mxu0 0.0
      %374 = vmatpush1.msra.mxu0 0.0
      %375 = vmatprep.subr.mxu0 0.0
      %376 = vmatpush1.msra.mxu0 0.0
      %377 = vmatprep.subr.mxu0 0.0
      %378 = vmatpush1.msra.mxu0 0.0
      %379 = vmatprep.subr.mxu0 0.0
      %380 = vmatpush1.msra.mxu0 0.0
      %381 = vmatprep.subr.mxu0 0.0
      %382 = vmatpush1.msra.mxu0 0.0
      %383 = vmatprep.subr.mxu0 0.0
      %384 = vmatpush1.msra.mxu0 0.0
      %385 = vmatprep.subr.mxu0 0.0
      %386 = vmatpush1.msra.mxu0 0.0
      %387 = vmatprep.subr.mxu0 0.0
      %388 = vmatpush1.msra.mxu0 0.0
      %389 = vmatprep.subr.mxu0 0.0
      %390 = vmatpush1.msra.mxu0 0.0
      %391 = vmatprep.subr.mxu0 0.0
      %392 = vmatpush1.msra.mxu0 0.0
      %393 = vmatprep.mubr.f32.mxu0 0.0
      %394 = vmatmul.mubr.f32.gmra.mrb[0].mxu0 %v322
      %v395 = vpop.f32.mrb[0].mxu0
      %v396 = vadd.f32 0.0, %v395
      %v397 = vpop.f32.mrb[0].mxu0
      %v398 = vadd.f32 0.0, %v397
      %399 = vdwg.mxu0
      %v401 = vsel %vm320, %v314, 0
      %v403 = vsel %vm324, %v312, 0
      %v405 = vsel %vm324, %v313, 0
      %407 = vmatprep.subr.mxu0 %v405
      %408 = vmatpush1.msra.mxu0 %v403
      %409 = vmatprep.subr.mxu0 0.0
      %410 = vmatpush1.msra.mxu0 0.0
      %411 = vmatprep.subr.mxu0 0.0
      %412 = vmatpush1.msra.mxu0 0.0
      %413 = vmatprep.subr.mxu0 0.0
      %414 = vmatpush1.msra.mxu0 0.0
      %415 = vmatprep.subr.mxu0 0.0
      %416 = vmatpush1.msra.mxu0 0.0
      %417 = vmatprep.subr.mxu0 0.0
      %418 = vmatpush1.msra.mxu0 0.0
      %419 = vmatprep.subr.mxu0 0.0
      %420 = vmatpush1.msra.mxu0 0.0
      %421 = vmatprep.subr.mxu0 0.0
      %422 = vmatpush1.msra.mxu0 0.0
      %423 = vmatprep.subr.mxu0 0.0
      %424 = vmatpush1.msra.mxu0 0.0
      %425 = vmatprep.subr.mxu0 0.0
      %426 = vmatpush1.msra.mxu0 0.0
      %427 = vmatprep.subr.mxu0 0.0
      %428 = vmatpush1.msra.mxu0 0.0
      %429 = vmatprep.subr.mxu0 0.0
      %430 = vmatpush1.msra.mxu0 0.0
      %431 = vmatprep.subr.mxu0 0.0
      %432 = vmatpush1.msra.mxu0 0.0
      %433 = vmatprep.subr.mxu0 0.0
      %434 = vmatpush1.msra.mxu0 0.0
      %435 = vmatprep.subr.mxu0 0.0
      %436 = vmatpush1.msra.mxu0 0.0
      %437 = vmatprep.subr.mxu0 0.0
      %438 = vmatpush1.msra.mxu0 0.0
      %439 = vmatprep.subr.mxu0 0.0
      %440 = vmatpush1.msra.mxu0 0.0
      %441 = vmatprep.subr.mxu0 0.0
      %442 = vmatpush1.msra.mxu0 0.0
      %443 = vmatprep.subr.mxu0 0.0
      %444 = vmatpush1.msra.mxu0 0.0
      %445 = vmatprep.subr.mxu0 0.0
      %446 = vmatpush1.msra.mxu0 0.0
      %447 = vmatprep.subr.mxu0 0.0
      %448 = vmatpush1.msra.mxu0 0.0
      %449 = vmatprep.subr.mxu0 0.0
      %450 = vmatpush1.msra.mxu0 0.0
      %451 = vmatprep.subr.mxu0 0.0
      %452 = vmatpush1.msra.mxu0 0.0
      %453 = vmatprep.subr.mxu0 0.0
      %454 = vmatpush1.msra.mxu0 0.0
      %455 = vmatprep.subr.mxu0 0.0
      %456 = vmatpush1.msra.mxu0 0.0
      %457 = vmatprep.subr.mxu0 0.0
      %458 = vmatpush1.msra.mxu0 0.0
      %459 = vmatprep.subr.mxu0 0.0
      %460 = vmatpush1.msra.mxu0 0.0
      %461 = vmatprep.subr.mxu0 0.0
      %462 = vmatpush1.msra.mxu0 0.0
      %463 = vmatprep.subr.mxu0 0.0
      %464 = vmatpush1.msra.mxu0 0.0
      %465 = vmatprep.subr.mxu0 0.0
      %466 = vmatpush1.msra.mxu0 0.0
      %467 = vmatprep.subr.mxu0 0.0
      %468 = vmatpush1.msra.mxu0 0.0
      %469 = vmatprep.subr.mxu0 0.0
      %470 = vmatpush1.msra.mxu0 0.0
      %471 = vmatprep.mubr.f32.mxu0 0.0
      %472 = vmatmul.mubr.f32.gmra.mrb[0].mxu0 %v401
      %v473 = vpop.f32.mrb[0].mxu0
      %v474 = vadd.f32 %v396, %v473
      %v475 = vpop.f32.mrb[0].mxu0
      %v476 = vadd.f32 %v398, %v475
      %477 = vdwg.mxu0
      %v480 = vcombine.low %v474, %v476
      %482 = vst [vmem:[%s298] sm:$0xff] %v480
      %v483 = vld [vmem:[%s3] sm:$0x3]
      %v485 = vsel %vm320, %v483, 0
      %487 = vmatprep.subr.mxu0 %v327
      %488 = vmatpush1.msra.mxu0 %v325
      %489 = vmatprep.subr.mxu0 0.0
      %490 = vmatpush1.msra.mxu0 0.0
      %491 = vmatprep.subr.mxu0 0.0
      %492 = vmatpush1.msra.mxu0 0.0
      %493 = vmatprep.subr.mxu0 0.0
      %494 = vmatpush1.msra.mxu0 0.0
      %495 = vmatprep.subr.mxu0 0.0
      %496 = vmatpush1.msra.mxu0 0.0
      %497 = vmatprep.subr.mxu0 0.0
      %498 = vmatpush1.msra.mxu0 0.0
      %499 = vmatprep.subr.mxu0 0.0
      %500 = vmatpush1.msra.mxu0 0.0
      %501 = vmatprep.subr.mxu0 0.0
      %502 = vmatpush1.msra.mxu0 0.0
      %503 = vmatprep.subr.mxu0 0.0
      %504 = vmatpush1.msra.mxu0 0.0
      %505 = vmatprep.subr.mxu0 0.0
      %506 = vmatpush1.msra.mxu0 0.0
      %507 = vmatprep.subr.mxu0 0.0
      %508 = vmatpush1.msra.mxu0 0.0
      %509 = vmatprep.subr.mxu0 0.0
      %510 = vmatpush1.msra.mxu0 0.0
      %511 = vmatprep.subr.mxu0 0.0
      %512 = vmatpush1.msra.mxu0 0.0
      %513 = vmatprep.subr.mxu0 0.0
      %514 = vmatpush1.msra.mxu0 0.0
      %515 = vmatprep.subr.mxu0 0.0
      %516 = vmatpush1.msra.mxu0 0.0
      %517 = vmatprep.subr.mxu0 0.0
      %518 = vmatpush1.msra.mxu0 0.0
      %519 = vmatprep.subr.mxu0 0.0
      %520 = vmatpush1.msra.mxu0 0.0
      %521 = vmatprep.subr.mxu0 0.0
      %522 = vmatpush1.msra.mxu0 0.0
      %523 = vmatprep.subr.mxu0 0.0
      %524 = vmatpush1.msra.mxu0 0.0
      %525 = vmatprep.subr.mxu0 0.0
      %526 = vmatpush1.msra.mxu0 0.0
      %527 = vmatprep.subr.mxu0 0.0
      %528 = vmatpush1.msra.mxu0 0.0
      %529 = vmatprep.subr.mxu0 0.0
      %530 = vmatpush1.msra.mxu0 0.0
      %531 = vmatprep.subr.mxu0 0.0
      %532 = vmatpush1.msra.mxu0 0.0
      %533 = vmatprep.subr.mxu0 0.0
      %534 = vmatpush1.msra.mxu0 0.0
      %535 = vmatprep.subr.mxu0 0.0
      %536 = vmatpush1.msra.mxu0 0.0
      %537 = vmatprep.subr.mxu0 0.0
      %538 = vmatpush1.msra.mxu0 0.0
      %539 = vmatprep.subr.mxu0 0.0
      %540 = vmatpush1.msra.mxu0 0.0
      %541 = vmatprep.subr.mxu0 0.0
      %542 = vmatpush1.msra.mxu0 0.0
      %543 = vmatprep.subr.mxu0 0.0
      %544 = vmatpush1.msra.mxu0 0.0
      %545 = vmatprep.subr.mxu0 0.0
      %546 = vmatpush1.msra.mxu0 0.0
      %547 = vmatprep.subr.mxu0 0.0
      %548 = vmatpush1.msra.mxu0 0.0
      %549 = vmatprep.subr.mxu0 0.0
      %550 = vmatpush1.msra.mxu0 0.0
      %551 = vmatprep.mubr.f32.mxu0 0.0
      %552 = vmatmul.mubr.f32.gmra.mrb[0].mxu0 %v485
      %v553 = vpop.f32.mrb[0].mxu0
      %v554 = vadd.f32 0.0, %v553
      %v555 = vpop.f32.mrb[0].mxu0
      %v556 = vadd.f32 0.0, %v555
      %557 = vdwg.mxu0
      %v560 = vcombine.low %v554, %v556
      %v562 = vunpack.c.l.s4 1983009808
      %v563 = vunpack.c.0.s8 %v562
      %v564 = vlaneseq
      %v565 = vshrl.u32 %v564, 7
      %v566 = vsub.s32 %v563, %v565
      %v567 = vrot.slane %v560, %v566
      %569 = vst [vmem:[%s303] sm:$0xf] %v567
      %vm570 = vcmask 1041408
      %v571 = vsel %vm570, %v554, 0.0
      %v572 = vsel %vm570, %v556, 0.0
      %v573 = vadd.f32 %v571, %v572
      %574 = vadd.xlane.f32.xlu0 %v573
      %v575 = vpop.xlane.xlu0 %574
      %vm576 = vcmask 1024
      %577 = vst.msk [vmem:[%s307] sm:$0x3] %vm576, %v575
      %v578 = vmul.f32 %v554, %v554
      %v579 = vmul.f32 %v556, %v556
      %v580 = vsel %vm570, %v578, 0.0
      %v581 = vsel %vm570, %v579, 0.0
      %v582 = vadd.f32 %v580, %v581
      %583 = vadd.xlane.f32.xlu0 %v582
      %v584 = vpop.xlane.xlu0 %583
      %585 = vst.msk [vmem:[%s311] sm:$0x3] %vm576, %v584
      %p586 = scmp.lt.s32.totalorder %s19, 1
      %s587 = scalar_select %p586, %s19, 1
      %s588 = smul.addr %s587, 2
      %s589 = smul.addr %s588, 4
      %s590 = scalar_lea.vmem %s4, %s589
      %p591 = scmp.lt.s32.totalorder %s19, 1
      %s592 = scalar_select %p591, %s19, 1
      %s593 = smul.addr %s592, 2
      %s594 = smul.addr %s593, 2
      %s595 = scalar_lea.vmem %s5, %s594
      %p596 = scmp.lt.s32.totalorder %s19, 1
      %s597 = scalar_select %p596, %s19, 1
      %s598 = smul.addr %s597, 2
      %s599 = scalar_lea.vmem %s6, %s598
      %p600 = scmp.lt.s32.totalorder %s19, 1
      %s601 = scalar_select %p600, %s19, 1
      %s602 = smul.addr %s601, 2
      %s603 = scalar_lea.vmem %s7, %s602
      // Predicated region
      $region37: #{ffc_forward.3} parent=35 // pred_check
        %p604 = pneg %p126
      $region38: #{ffc_forward.3} parent=35 // pred_check_branch
        %606 = sbr.rel (%p604) target = $region40
      $region39: #{ffc_forward.3} parent=35 // pred_region
        _
      $region40: #{ffc_forward.3} parent=35 // pred_fallthru
        _
      // Predicated region
      $region41: #{ffc_forward.3} parent=35 // pred_check
        %p607 = pneg %p152
      $region42: #{ffc_forward.3} parent=35 // pred_check_branch
        %609 = sbr.rel (%p607) target = $region44
      $region43: #{ffc_forward.3} parent=35 // pred_region
        _
      $region44: #{ffc_forward.3} parent=35 // pred_fallthru
        _
      // Predicated region
      $region45: #{ffc_forward.3} parent=35 // pred_check
        %p610 = pneg %p178
      $region46: #{ffc_forward.3} parent=35 // pred_check_branch
        %612 = sbr.rel (%p610) target = $region48
      $region47: #{ffc_forward.3} parent=35 // pred_region
        _
      $region48: #{ffc_forward.3} parent=35 // pred_fallthru
        _
      // Predicated region
      $region49: #{ffc_forward.3} parent=35 // pred_check
        %p613 = pneg %p204
      $region50: #{ffc_forward.3} parent=35 // pred_check_branch
        %615 = sbr.rel (%p613) target = $region52
      $region51: #{ffc_forward.3} parent=35 // pred_region
        _
      $region52: #{ffc_forward.3} parent=35 // pred_fallthru
        _
    $region36: #{ffc_forward.3} parent=5 // pred_fallthru
      _
    %p616 = scmp.le.s32.totalorder 2, %s14
    // Predicated region
    $region53: #{ffc_forward.3} parent=5 // pred_check
      %p617 = pneg %p616
    $region54: #{ffc_forward.3} parent=5 // pred_check_branch
      %619 = sbr.rel (%p617) target = $region56
    $region55: #{ffc_forward.3} parent=5 // pred_region
      %s620 = ssub.s32 %s14, 2
      // Predicated region
      $region57: #{ffc_forward.3} parent=55 // pred_check
        %p621 = pneg %p132
      $region58: #{ffc_forward.3} parent=55 // pred_check_branch
        %623 = sbr.rel (%p621) target = $region60
      $region59: #{ffc_forward.3} parent=55 // pred_region
        %p624 = scmp.lt.s32.totalorder %s20, 1
        %s625 = scalar_select %p624, %s20, 1
        %s626 = smul.addr %s625, 2
        %s627 = smul.addr %s626, 4
        %s628 = scalar_lea.vmem %s4, %s627
      $region60: #{ffc_forward.3} parent=55 // pred_fallthru
        _
      // Predicated region
      $region61: #{ffc_forward.3} parent=55 // pred_check
        %p629 = pneg %p158
      $region62: #{ffc_forward.3} parent=55 // pred_check_branch
        %631 = sbr.rel (%p629) target = $region64
      $region63: #{ffc_forward.3} parent=55 // pred_region
        %p632 = scmp.lt.s32.totalorder %s20, 1
        %s633 = scalar_select %p632, %s20, 1
        %s634 = smul.addr %s633, 2
        %s635 = smul.addr %s634, 2
        %s636 = scalar_lea.vmem %s5, %s635
      $region64: #{ffc_forward.3} parent=55 // pred_fallthru
        _
      // Predicated region
      $region65: #{ffc_forward.3} parent=55 // pred_check
        %p637 = pneg %p184
      $region66: #{ffc_forward.3} parent=55 // pred_check_branch
        %639 = sbr.rel (%p637) target = $region68
      $region67: #{ffc_forward.3} parent=55 // pred_region
        %p640 = scmp.lt.s32.totalorder %s20, 1
        %s641 = scalar_select %p640, %s20, 1
        %s642 = smul.addr %s641, 2
        %s643 = scalar_lea.vmem %s6, %s642
      $region68: #{ffc_forward.3} parent=55 // pred_fallthru
        _
      // Predicated region
      $region69: #{ffc_forward.3} parent=55 // pred_check
        %p644 = pneg %p210
      $region70: #{ffc_forward.3} parent=55 // pred_check_branch
        %646 = sbr.rel (%p644) target = $region72
      $region71: #{ffc_forward.3} parent=55 // pred_region
        %p647 = scmp.lt.s32.totalorder %s20, 1
        %s648 = scalar_select %p647, %s20, 1
        %s649 = smul.addr %s648, 2
        %s650 = scalar_lea.vmem %s7, %s649
      $region72: #{ffc_forward.3} parent=55 // pred_fallthru
        _
    $region56: #{ffc_forward.3} parent=5 // pred_fallthru
      _
  $region6: #{ffc_forward.3} parent=0 // loop_footer
    %s18 = sadd.s32 1, %s14
  $region7: #{ffc_forward.3} parent=0 // loop_footer_branch
    %13 = sbr.rel target = $region3
  $region8: #{ffc_forward.3} parent=0 // loop_exit
    _

// kernel: ffc_forward.4
$region0: #{ffc_forward.4}
  #allocation0 [shape = 'u32[]', space=smem, size = 0x4, offset = 0x4, fixed_abs, tag = 'smem constant byte address 0x4 - core index']
  #allocation1 [shape = 'u32[144,128]{1,0:T(1,128)}', space=vmem, size = 0x12000, scoped, tag = 'internal scratch']
  %s0 = inlined_call_operand.vmem [shape: f32[2,2,256], index: 0, kind: input, shape index: {}]
  %s1 = inlined_call_operand.vmem [shape: f32[2,1], index: 1, kind: input, shape index: {}]
  %s2 = inlined_call_operand.vmem [shape: f32[2,1], index: 2, kind: input, shape index: {}]
  %s3 = inlined_call_operand.vmem [shape: f32[256,144], index: 3, kind: input, shape index: {}]
  %s4 = inlined_call_operand.vmem [shape: f32[256,144], index: 4, kind: input, shape index: {}]
  %s5 = inlined_call_operand.vmem [shape: f32[4,2], index: 5, kind: input, shape index: {}]
  %s6 = inlined_call_operand.vmem [shape: f32[4,2], index: 6, kind: input, shape index: {}]
  %s7 = inlined_call_operand.vmem [shape: f32[2,4,144], index: 7, kind: output, shape index: {0}]
  %s8 = inlined_call_operand.vmem [shape: f32[2,4,1], index: 8, kind: output, shape index: {1}]
  %s9 = inlined_call_operand.vmem [shape: f32[2,4,1], index: 9, kind: output, shape index: {2}]
  %10 = xla_tuple %s7, %s8, %s9
  %s11 = sld [smem:[#allocation0]]
  $region77: #{ffc_forward.4} parent=0
    _
  %s13 = ssub.s32 1, %s11
  %s14 = scalar_select 0, %s13, %s11
  loop: start=0, step=1, limit=4
  $region2: #{ffc_forward.4} parent=0 // loop_pre_header
    _
  $region3: #{ffc_forward.4} parent=0 // loop_header
    %s16 = sphi 0, %s20
    %p17 = scmp.ge.s32.totalorder %s16, 4
    %s26 = sphi 0, %s28
    %s29 = sphi 0, %s26
    %s30 = sphi 0, %s29
    %s46 = sphi 0, %s30
    %s50 = sphi 0, %s50
    %s52 = sphi 0, %s50
    %s53 = sphi 0, %s52
    %s67 = sphi 0, %s53
    %s71 = sphi 0, %s71
    %s73 = sphi 0, %s71
    %s74 = sphi 0, %s73
    %s88 = sphi 0, %s74
    %s92 = sphi 0, %s92
    %s94 = sphi 0, %s92
    %s95 = sphi 0, %s94
    %s109 = sphi 0, %s95
    %s113 = sphi 0, %s113
    %s115 = sphi 0, %s113
    %s116 = sphi 0, %s115
    %s130 = sphi 0, %s116
    %s134 = sphi 0, %s134
    %s136 = sphi 0, %s134
    %s137 = sphi 0, %s136
    %s151 = sphi 0, %s137
    %s155 = sphi 0, %s155
    %s157 = sphi 0, %s155
    %s158 = sphi 0, %s157
    %s172 = sphi 0, %s158
    %s178 = sphi 0, %s180
    %s181 = sphi 0, %s178
    %s182 = sphi 0, %s181
    %s198 = sphi 0, %s182
    %s204 = sphi 0, %s206
    %s207 = sphi 0, %s204
    %s208 = sphi 0, %s207
    %s224 = sphi 0, %s208
    %s230 = sphi 0, %s232
    %s233 = sphi 0, %s230
    %s234 = sphi 0, %s233
    %s250 = sphi 0, %s234
  $region4: #{ffc_forward.4} parent=0 // loop_header_branch
    %19 = sbr.rel (%p17) target = $region8
  $region5: #{ffc_forward.4} parent=0 // loop_body
    %s21 = ssub.s32 %s16, 1
    %s22 = ssub.s32 %s16, 2
    %s23 = sadd.s32 %s16, 1
    %s24 = ssub.s32 %s16, %s23
    %p25 = scmp.eq.s32.totalorder %s24, 0
    %s27 = sadd.s32 %s26, 1
    %s28 = scalar_select %p25, %s26, %s27
    %p31 = pneg %p25
    %p32 = scmp.eq.s32.totalorder %s16, 1
    %p33 = por %p31, %p32
    %p34 = scmp.ne.s32.totalorder %s26, %s29
    %p35 = scmp.eq.s32.totalorder %s16, 0
    %p36 = por %p34, %p35
    %p37 = scmp.ne.s32.totalorder %s26, %s29
    %p38 = scmp.eq.s32.totalorder %s21, 1
    %p39 = por %p37, %p38
    %p40 = scmp.ne.s32.totalorder %s29, %s30
    %p41 = scmp.eq.s32.totalorder %s21, 0
    %p42 = por %p40, %p41
    %p43 = scmp.ne.s32.totalorder %s29, %s30
    %p44 = scmp.eq.s32.totalorder %s22, 1
    %p45 = por %p43, %p44
    %p47 = scmp.ne.s32.totalorder %s30, %s46
    %p48 = scmp.eq.s32.totalorder %s22, 0
    %p49 = por %p47, %p48
    %s51 = sadd.s32 %s50, 1
    %p54 = scmp.eq.s32.totalorder %s16, 1
    %p55 = scmp.ne.s32.totalorder %s50, %s52
    %p56 = scmp.eq.s32.totalorder %s16, 0
    %p57 = por %p55, %p56
    %p58 = scmp.ne.s32.totalorder %s50, %s52
    %p59 = scmp.eq.s32.totalorder %s21, 1
    %p60 = por %p58, %p59
    %p61 = scmp.ne.s32.totalorder %s52, %s53
    %p62 = scmp.eq.s32.totalorder %s21, 0
    %p63 = por %p61, %p62
    %p64 = scmp.ne.s32.totalorder %s52, %s53
    %p65 = scmp.eq.s32.totalorder %s22, 1
    %p66 = por %p64, %p65
    %p68 = scmp.ne.s32.totalorder %s53, %s67
    %p69 = scmp.eq.s32.totalorder %s22, 0
    %p70 = por %p68, %p69
    %s72 = sadd.s32 %s71, 1
    %p75 = scmp.eq.s32.totalorder %s16, 1
    %p76 = scmp.ne.s32.totalorder %s71, %s73
    %p77 = scmp.eq.s32.totalorder %s16, 0
    %p78 = por %p76, %p77
    %p79 = scmp.ne.s32.totalorder %s71, %s73
    %p80 = scmp.eq.s32.totalorder %s21, 1
    %p81 = por %p79, %p80
    %p82 = scmp.ne.s32.totalorder %s73, %s74
    %p83 = scmp.eq.s32.totalorder %s21, 0
    %p84 = por %p82, %p83
    %p85 = scmp.ne.s32.totalorder %s73, %s74
    %p86 = scmp.eq.s32.totalorder %s22, 1
    %p87 = por %p85, %p86
    %p89 = scmp.ne.s32.totalorder %s74, %s88
    %p90 = scmp.eq.s32.totalorder %s22, 0
    %p91 = por %p89, %p90
    %s93 = sadd.s32 %s92, 1
    %p96 = scmp.eq.s32.totalorder %s16, 1
    %p97 = scmp.ne.s32.totalorder %s92, %s94
    %p98 = scmp.eq.s32.totalorder %s16, 0
    %p99 = por %p97, %p98
    %p100 = scmp.ne.s32.totalorder %s92, %s94
    %p101 = scmp.eq.s32.totalorder %s21, 1
    %p102 = por %p100, %p101
    %p103 = scmp.ne.s32.totalorder %s94, %s95
    %p104 = scmp.eq.s32.totalorder %s21, 0
    %p105 = por %p103, %p104
    %p106 = scmp.ne.s32.totalorder %s94, %s95
    %p107 = scmp.eq.s32.totalorder %s22, 1
    %p108 = por %p106, %p107
    %p110 = scmp.ne.s32.totalorder %s95, %s109
    %p111 = scmp.eq.s32.totalorder %s22, 0
    %p112 = por %p110, %p111
    %s114 = sadd.s32 %s113, 1
    %p117 = scmp.eq.s32.totalorder %s16, 1
    %p118 = scmp.ne.s32.totalorder %s113, %s115
    %p119 = scmp.eq.s32.totalorder %s16, 0
    %p120 = por %p118, %p119
    %p121 = scmp.ne.s32.totalorder %s113, %s115
    %p122 = scmp.eq.s32.totalorder %s21, 1
    %p123 = por %p121, %p122
    %p124 = scmp.ne.s32.totalorder %s115, %s116
    %p125 = scmp.eq.s32.totalorder %s21, 0
    %p126 = por %p124, %p125
    %p127 = scmp.ne.s32.totalorder %s115, %s116
    %p128 = scmp.eq.s32.totalorder %s22, 1
    %p129 = por %p127, %p128
    %p131 = scmp.ne.s32.totalorder %s116, %s130
    %p132 = scmp.eq.s32.totalorder %s22, 0
    %p133 = por %p131, %p132
    %s135 = sadd.s32 %s134, 1
    %p138 = scmp.eq.s32.totalorder %s16, 1
    %p139 = scmp.ne.s32.totalorder %s134, %s136
    %p140 = scmp.eq.s32.totalorder %s16, 0
    %p141 = por %p139, %p140
    %p142 = scmp.ne.s32.totalorder %s134, %s136
    %p143 = scmp.eq.s32.totalorder %s21, 1
    %p144 = por %p142, %p143
    %p145 = scmp.ne.s32.totalorder %s136, %s137
    %p146 = scmp.eq.s32.totalorder %s21, 0
    %p147 = por %p145, %p146
    %p148 = scmp.ne.s32.totalorder %s136, %s137
    %p149 = scmp.eq.s32.totalorder %s22, 1
    %p150 = por %p148, %p149
    %p152 = scmp.ne.s32.totalorder %s137, %s151
    %p153 = scmp.eq.s32.totalorder %s22, 0
    %p154 = por %p152, %p153
    %s156 = sadd.s32 %s155, 1
    %p159 = scmp.eq.s32.totalorder %s16, 1
    %p160 = scmp.ne.s32.totalorder %s155, %s157
    %p161 = scmp.eq.s32.totalorder %s16, 0
    %p162 = por %p160, %p161
    %p163 = scmp.ne.s32.totalorder %s155, %s157
    %p164 = scmp.eq.s32.totalorder %s21, 1
    %p165 = por %p163, %p164
    %p166 = scmp.ne.s32.totalorder %s157, %s158
    %p167 = scmp.eq.s32.totalorder %s21, 0
    %p168 = por %p166, %p167
    %p169 = scmp.ne.s32.totalorder %s157, %s158
    %p170 = scmp.eq.s32.totalorder %s22, 1
    %p171 = por %p169, %p170
    %p173 = scmp.ne.s32.totalorder %s158, %s172
    %p174 = scmp.eq.s32.totalorder %s22, 0
    %p175 = por %p173, %p174
    %s176 = ssub.s32 %s16, %s23
    %p177 = scmp.eq.s32.totalorder %s176, 0
    %s179 = sadd.s32 %s178, 1
    %s180 = scalar_select %p177, %s178, %s179
    %p183 = pneg %p177
    %p184 = scmp.eq.s32.totalorder %s16, 1
    %p185 = por %p183, %p184
    %p186 = scmp.ne.s32.totalorder %s178, %s181
    %p187 = scmp.eq.s32.totalorder %s16, 0
    %p188 = por %p186, %p187
    %p189 = scmp.ne.s32.totalorder %s178, %s181
    %p190 = scmp.eq.s32.totalorder %s21, 1
    %p191 = por %p189, %p190
    %p192 = scmp.ne.s32.totalorder %s181, %s182
    %p193 = scmp.eq.s32.totalorder %s21, 0
    %p194 = por %p192, %p193
    %p195 = scmp.ne.s32.totalorder %s181, %s182
    %p196 = scmp.eq.s32.totalorder %s22, 1
    %p197 = por %p195, %p196
    %p199 = scmp.ne.s32.totalorder %s182, %s198
    %p200 = scmp.eq.s32.totalorder %s22, 0
    %p201 = por %p199, %p200
    %s202 = ssub.s32 %s16, %s23
    %p203 = scmp.eq.s32.totalorder %s202, 0
    %s205 = sadd.s32 %s204, 1
    %s206 = scalar_select %p203, %s204, %s205
    %p209 = pneg %p203
    %p210 = scmp.eq.s32.totalorder %s16, 1
    %p211 = por %p209, %p210
    %p212 = scmp.ne.s32.totalorder %s204, %s207
    %p213 = scmp.eq.s32.totalorder %s16, 0
    %p214 = por %p212, %p213
    %p215 = scmp.ne.s32.totalorder %s204, %s207
    %p216 = scmp.eq.s32.totalorder %s21, 1
    %p217 = por %p215, %p216
    %p218 = scmp.ne.s32.totalorder %s207, %s208
    %p219 = scmp.eq.s32.totalorder %s21, 0
    %p220 = por %p218, %p219
    %p221 = scmp.ne.s32.totalorder %s207, %s208
    %p222 = scmp.eq.s32.totalorder %s22, 1
    %p223 = por %p221, %p222
    %p225 = scmp.ne.s32.totalorder %s208, %s224
    %p226 = scmp.eq.s32.totalorder %s22, 0
    %p227 = por %p225, %p226
    %s228 = ssub.s32 %s16, %s23
    %p229 = scmp.eq.s32.totalorder %s228, 0
    %s231 = sadd.s32 %s230, 1
    %s232 = scalar_select %p229, %s230, %s231
    %p235 = pneg %p229
    %p236 = scmp.eq.s32.totalorder %s16, 1
    %p237 = por %p235, %p236
    %p238 = scmp.ne.s32.totalorder %s230, %s233
    %p239 = scmp.eq.s32.totalorder %s16, 0
    %p240 = por %p238, %p239
    %p241 = scmp.ne.s32.totalorder %s230, %s233
    %p242 = scmp.eq.s32.totalorder %s21, 1
    %p243 = por %p241, %p242
    %p244 = scmp.ne.s32.totalorder %s233, %s234
    %p245 = scmp.eq.s32.totalorder %s21, 0
    %p246 = por %p244, %p245
    %p247 = scmp.ne.s32.totalorder %s233, %s234
    %p248 = scmp.eq.s32.totalorder %s22, 1
    %p249 = por %p247, %p248
    %p251 = scmp.ne.s32.totalorder %s234, %s250
    %p252 = scmp.eq.s32.totalorder %s22, 0
    %p253 = por %p251, %p252
    %p254 = scmp.le.s32.totalorder 1, %s16
    %p255 = scmp.lt.s32.totalorder %s16, 3
    %p256 = pnand %p254, %p255
    %p257 = pneg %p256
    // Predicated region
    $region9: #{ffc_forward.4} parent=5 // pred_check
      _
    $region10: #{ffc_forward.4} parent=5 // pred_check_branch
      %259 = sbr.rel (%p256) target = $region12
    $region11: #{ffc_forward.4} parent=5 // pred_region
      %s260 = ssub.s32 %s16, 1
      // Predicated region
      $region13: #{ffc_forward.4} parent=11 // pred_check
        %p261 = pneg %p63
      $region14: #{ffc_forward.4} parent=11 // pred_check_branch
        %263 = sbr.rel (%p261) target = $region16
      $region15: #{ffc_forward.4} parent=11 // pred_region
        _
      $region16: #{ffc_forward.4} parent=11 // pred_fallthru
        _
      // Predicated region
      $region17: #{ffc_forward.4} parent=11 // pred_check
        %p264 = pneg %p84
      $region18: #{ffc_forward.4} parent=11 // pred_check_branch
        %266 = sbr.rel (%p264) target = $region20
      $region19: #{ffc_forward.4} parent=11 // pred_region
        _
      $region20: #{ffc_forward.4} parent=11 // pred_fallthru
        _
      // Predicated region
      $region21: #{ffc_forward.4} parent=11 // pred_check
        %p267 = pneg %p105
      $region22: #{ffc_forward.4} parent=11 // pred_check_branch
        %269 = sbr.rel (%p267) target = $region24
      $region23: #{ffc_forward.4} parent=11 // pred_region
        _
      $region24: #{ffc_forward.4} parent=11 // pred_fallthru
        _
      // Predicated region
      $region25: #{ffc_forward.4} parent=11 // pred_check
        %p270 = pneg %p126
      $region26: #{ffc_forward.4} parent=11 // pred_check_branch
        %272 = sbr.rel (%p270) target = $region28
      $region27: #{ffc_forward.4} parent=11 // pred_region
        _
      $region28: #{ffc_forward.4} parent=11 // pred_fallthru
        _
      // Predicated region
      $region29: #{ffc_forward.4} parent=11 // pred_check
        %p273 = pneg %p147
      $region30: #{ffc_forward.4} parent=11 // pred_check_branch
        %275 = sbr.rel (%p273) target = $region32
      $region31: #{ffc_forward.4} parent=11 // pred_region
        _
      $region32: #{ffc_forward.4} parent=11 // pred_fallthru
        _
      // Predicated region
      $region33: #{ffc_forward.4} parent=11 // pred_check
        %p276 = pneg %p168
      $region34: #{ffc_forward.4} parent=11 // pred_check_branch
        %278 = sbr.rel (%p276) target = $region36
      $region35: #{ffc_forward.4} parent=11 // pred_region
        _
      $region36: #{ffc_forward.4} parent=11 // pred_fallthru
        _
    $region12: #{ffc_forward.4} parent=5 // pred_fallthru
      _
    %p279 = scmp.lt.s32.totalorder %s16, 2
    // Predicated region
    $region37: #{ffc_forward.4} parent=5 // pred_check
      %p280 = pneg %p279
    $region38: #{ffc_forward.4} parent=5 // pred_check_branch
      %282 = sbr.rel (%p280) target = $region40
    $region39: #{ffc_forward.4} parent=5 // pred_region
      // Predicated region
      $region41: #{ffc_forward.4} parent=39 // pred_check
        %p283 = pneg %p36
      $region42: #{ffc_forward.4} parent=39 // pred_check_branch
        %285 = sbr.rel (%p283) target = $region44
      $region43: #{ffc_forward.4} parent=39 // pred_region
        %p286 = scmp.lt.s32.totalorder %s16, 1
        %s287 = scalar_select %p286, %s16, 1
        %s288 = smul.addr %s287, 2
        %s289 = smul.addr %s288, 2
        %s290 = scalar_lea.vmem %s0, %s289
      $region44: #{ffc_forward.4} parent=39 // pred_fallthru
        _
    $region40: #{ffc_forward.4} parent=5 // pred_fallthru
      _
    %p291 = scmp.le.s32.totalorder 1, %s16
    %p292 = scmp.lt.s32.totalorder %s16, 3
    %p293 = pnand %p291, %p292
    %p294 = pneg %p293
    // Predicated region
    $region45: #{ffc_forward.4} parent=5 // pred_check
      _
    $region46: #{ffc_forward.4} parent=5 // pred_check_branch
      %296 = sbr.rel (%p293) target = $region48
    $region47: #{ffc_forward.4} parent=5 // pred_region
      %s297 = ssub.s32 %s16, 1
      %p298 = scmp.lt.s32.totalorder %s21, 1
      %s299 = scalar_select %p298, %s21, 1
      %s300 = smul.addr %s299, 2
      %s301 = smul.addr %s300, 2
      %s302 = scalar_lea.vmem %s0, %s301
      %p303 = pneg %p42
      %p304 = pneg %p39
      %p305 = pneg %p63
      %p306 = pneg %p60
      %p307 = pneg %p84
      %p308 = pneg %p81
      %p309 = pneg %p105
      %p310 = pneg %p102
      %p311 = pneg %p126
      %p312 = pneg %p123
      %p313 = pneg %p147
      %p314 = pneg %p144
      %p315 = pneg %p168
      %p316 = pneg %p165
      %p317 = pneg %p194
      %p318 = pneg %p191
      %p319 = scmp.lt.s32.totalorder %s21, 1
      %s320 = scalar_select %p319, %s21, 1
      %s321 = smul.addr %s320, 2
      %s322 = smul.addr %s321, 4
      %s323 = scalar_lea.vmem %s7, %s322
      %p324 = pneg %p220
      %p325 = pneg %p217
      %p326 = scmp.lt.s32.totalorder %s21, 1
      %s327 = scalar_select %p326, %s21, 1
      %s328 = smul.addr %s327, 4
      %s329 = scalar_lea.vmem %s8, %s328
      %p330 = pneg %p246
      %p331 = pneg %p243
      %p332 = scmp.lt.s32.totalorder %s21, 1
      %s333 = scalar_select %p332, %s21, 1
      %s334 = smul.addr %s333, 4
      %s335 = scalar_lea.vmem %s9, %s334
      %p336 = scmp.lt.s32.totalorder %s21, 1
      %s337 = scalar_select %p336, %s21, 1
      %s338 = smul.addr %s337, 2
      %s339 = smul.addr %s338, 2
      %s340 = scalar_lea.vmem %s0, %s339
      %p341 = scmp.lt.s32.totalorder %s21, 1
      %s342 = scalar_select %p341, %s21, 1
      %s343 = smul.addr %s342, 2
      %s344 = smul.addr %s343, 4
      %s345 = scalar_lea.vmem %s7, %s344
      %p346 = scmp.lt.s32.totalorder %s21, 1
      %s347 = scalar_select %p346, %s21, 1
      %s348 = smul.addr %s347, 4
      %s349 = scalar_lea.vmem %s8, %s348
      %p350 = scmp.lt.s32.totalorder %s21, 1
      %s351 = scalar_select %p350, %s21, 1
      %s352 = smul.addr %s351, 4
      %s353 = scalar_lea.vmem %s9, %s352
      %v354 = vld [vmem:[%s340] sm:$0xf]
      %v355 = vld [vmem:[%s1] sm:$0x3]
      %357 = vset.pattern.permute.xlu0 0
      %358 = vperm.xlu0 %357, %v355
      %v359 = vpop.permute.xlu0 %358
      %v361 = vunpack.c.l.s4 269488144
      %v362 = vunpack.c.0.s8 %v361
      %v363 = vlaneseq
      %v364 = vshrl.u32 %v363, 7
      %v365 = vsub.s32 %v362, %v364
      %v366 = vrot.slane %v359, %v365
      %v368 = vmul.f32 %v354, %v366
      %v369 = vld [vmem:[%s2] sm:$0x3]
      %371 = vset.pattern.permute.xlu0 0
      %372 = vperm.xlu0 %371, %v369
      %v373 = vpop.permute.xlu0 %372
      %v375 = vunpack.c.l.s4 269488144
      %v376 = vunpack.c.0.s8 %v375
      %v377 = vlaneseq
      %v378 = vshrl.u32 %v377, 7
      %v379 = vsub.s32 %v376, %v378
      %v380 = vrot.slane %v373, %v379
      %v382 = vadd.f32 %v368, %v380
      %v383 = vmax.f32 %v382, 0.0
      %v384 = vld [vmem:[%s3] sm:$0xff]
      %v385 = vld [vmem:[%s3 + $0x8] sm:$0xff]
      %v386 = vld [vmem:[%s3 + $0x10] sm:$0xff]
      %v387 = vld [vmem:[%s3 + $0x18] sm:$0xff]
      %v388 = vld [vmem:[%s3 + $0x20] sm:$0xff]
      %v389 = vld [vmem:[%s3 + $0x28] sm:$0xff]
      %v390 = vld [vmem:[%s3 + $0x30] sm:$0xff]
      %v391 = vld [vmem:[%s3 + $0x38] sm:$0xff]
      %v392 = vld [vmem:[%s3 + $0x40] sm:$0xff]
      %v393 = vld [vmem:[%s3 + $0x48] sm:$0xff]
      %v394 = vld [vmem:[%s3 + $0x50] sm:$0xff]
      %v395 = vld [vmem:[%s3 + $0x58] sm:$0xff]
      %v396 = vld [vmem:[%s3 + $0x60] sm:$0xff]
      %v397 = vld [vmem:[%s3 + $0x68] sm:$0xff]
      %v398 = vld [vmem:[%s3 + $0x70] sm:$0xff]
      %v399 = vld [vmem:[%s3 + $0x78] sm:$0xff]
      %v400 = vld [vmem:[%s3 + $0x80] sm:$0xff]
      %v401 = vld [vmem:[%s3 + $0x88] sm:$0xff]
      %v402 = vld [vmem:[%s3 + $0x90] sm:$0xff]
      %v403 = vld [vmem:[%s3 + $0x98] sm:$0xff]
      %v404 = vld [vmem:[%s3 + $0xa0] sm:$0xff]
      %v405 = vld [vmem:[%s3 + $0xa8] sm:$0xff]
      %v406 = vld [vmem:[%s3 + $0xb0] sm:$0xff]
      %v407 = vld [vmem:[%s3 + $0xb8] sm:$0xff]
      %v408 = vld [vmem:[%s3 + $0xc0] sm:$0xff]
      %v409 = vld [vmem:[%s3 + $0xc8] sm:$0xff]
      %v410 = vld [vmem:[%s3 + $0xd0] sm:$0xff]
      %v411 = vld [vmem:[%s3 + $0xd8] sm:$0xff]
      %v412 = vld [vmem:[%s3 + $0xe0] sm:$0xff]
      %v413 = vld [vmem:[%s3 + $0xe8] sm:$0xff]
      %v414 = vld [vmem:[%s3 + $0xf0] sm:$0xff]
      %v415 = vld [vmem:[%s3 + $0xf8] sm:$0xff]
      %v416 = vld [vmem:[%s3 + $0x100] sm:$0xff]
      %v417 = vld [vmem:[%s3 + $0x108] sm:$0xff]
      %v418 = vld [vmem:[%s3 + $0x110] sm:$0xff]
      %v419 = vld [vmem:[%s3 + $0x118] sm:$0xff]
      %v420 = vld [vmem:[%s3 + $0x120] sm:$0xff]
      %v421 = vld [vmem:[%s3 + $0x128] sm:$0xff]
      %v422 = vld [vmem:[%s3 + $0x130] sm:$0xff]
      %v423 = vld [vmem:[%s3 + $0x138] sm:$0xff]
      %v424 = vld [vmem:[%s3 + $0x140] sm:$0xff]
      %v425 = vld [vmem:[%s3 + $0x148] sm:$0xff]
      %v426 = vld [vmem:[%s3 + $0x150] sm:$0xff]
      %v427 = vld [vmem:[%s3 + $0x158] sm:$0xff]
      %v428 = vld [vmem:[%s3 + $0x160] sm:$0xff]
      %v429 = vld [vmem:[%s3 + $0x168] sm:$0xff]
      %v430 = vld [vmem:[%s3 + $0x170] sm:$0xff]
      %v431 = vld [vmem:[%s3 + $0x178] sm:$0xff]
      %v432 = vld [vmem:[%s3 + $0x180] sm:$0xff]
      %v433 = vld [vmem:[%s3 + $0x188] sm:$0xff]
      %v434 = vld [vmem:[%s3 + $0x190] sm:$0xff]
      %v435 = vld [vmem:[%s3 + $0x198] sm:$0xff]
      %v436 = vld [vmem:[%s3 + $0x1a0] sm:$0xff]
      %v437 = vld [vmem:[%s3 + $0x1a8] sm:$0xff]
      %v438 = vld [vmem:[%s3 + $0x1b0] sm:$0xff]
      %v439 = vld [vmem:[%s3 + $0x1b8] sm:$0xff]
      %v440 = vld [vmem:[%s3 + $0x1c0] sm:$0xff]
      %v441 = vld [vmem:[%s3 + $0x1c8] sm:$0xff]
      %v442 = vld [vmem:[%s3 + $0x1d0] sm:$0xff]
      %v443 = vld [vmem:[%s3 + $0x1d8] sm:$0xff]
      %v444 = vld [vmem:[%s3 + $0x1e0] sm:$0xff]
      %v445 = vld [vmem:[%s3 + $0x1e8] sm:$0xff]
      %v446 = vld [vmem:[%s3 + $0x1f0] sm:$0xff]
      %v447 = vld [vmem:[%s3 + $0x1f8] sm:$0xff]
      %v450 = vunpack.c.l.s4 1983009808
      %v451 = vunpack.c.0.s8 %v450
      %v452 = vlaneseq
      %v453 = vshrl.u32 %v452, 7
      %v454 = vsub.s32 %v451, %v453
      %v455 = vrot.slane %v383, %v454
      %v456 = vcombine.high %v455, %v455
      %459 = vmatprep.subr.mxu0 %v385
      %460 = vmatpush1.msra.mxu0 %v384
      %461 = vmatprep.subr.mxu0 %v387
      %462 = vmatpush1.msra.mxu0 %v386
      %463 = vmatprep.subr.mxu0 %v389
      %464 = vmatpush1.msra.mxu0 %v388
      %465 = vmatprep.subr.mxu0 %v391
      %466 = vmatpush1.msra.mxu0 %v390
      %467 = vmatprep.subr.mxu0 %v393
      %468 = vmatpush1.msra.mxu0 %v392
      %469 = vmatprep.subr.mxu0 %v395
      %470 = vmatpush1.msra.mxu0 %v394
      %471 = vmatprep.subr.mxu0 %v397
      %472 = vmatpush1.msra.mxu0 %v396
      %473 = vmatprep.subr.mxu0 %v399
      %474 = vmatpush1.msra.mxu0 %v398
      %475 = vmatprep.subr.mxu0 %v401
      %476 = vmatpush1.msra.mxu0 %v400
      %477 = vmatprep.subr.mxu0 %v403
      %478 = vmatpush1.msra.mxu0 %v402
      %479 = vmatprep.subr.mxu0 %v405
      %480 = vmatpush1.msra.mxu0 %v404
      %481 = vmatprep.subr.mxu0 %v407
      %482 = vmatpush1.msra.mxu0 %v406
      %483 = vmatprep.subr.mxu0 %v409
      %484 = vmatpush1.msra.mxu0 %v408
      %485 = vmatprep.subr.mxu0 %v411
      %486 = vmatpush1.msra.mxu0 %v410
      %487 = vmatprep.subr.mxu0 %v413
      %488 = vmatpush1.msra.mxu0 %v412
      %489 = vmatprep.subr.mxu0 %v415
      %490 = vmatpush1.msra.mxu0 %v414
      %491 = vmatprep.subr.mxu0 %v417
      %492 = vmatpush1.msra.mxu0 %v416
      %493 = vmatprep.subr.mxu0 %v419
      %494 = vmatpush1.msra.mxu0 %v418
      %495 = vmatprep.subr.mxu0 %v421
      %496 = vmatpush1.msra.mxu0 %v420
      %497 = vmatprep.subr.mxu0 %v423
      %498 = vmatpush1.msra.mxu0 %v422
      %499 = vmatprep.subr.mxu0 %v425
      %500 = vmatpush1.msra.mxu0 %v424
      %501 = vmatprep.subr.mxu0 %v427
      %502 = vmatpush1.msra.mxu0 %v426
      %503 = vmatprep.subr.mxu0 %v429
      %504 = vmatpush1.msra.mxu0 %v428
      %505 = vmatprep.subr.mxu0 %v431
      %506 = vmatpush1.msra.mxu0 %v430
      %507 = vmatprep.subr.mxu0 %v433
      %508 = vmatpush1.msra.mxu0 %v432
      %509 = vmatprep.subr.mxu0 %v435
      %510 = vmatpush1.msra.mxu0 %v434
      %511 = vmatprep.subr.mxu0 %v437
      %512 = vmatpush1.msra.mxu0 %v436
      %513 = vmatprep.subr.mxu0 %v439
      %514 = vmatpush1.msra.mxu0 %v438
      %515 = vmatprep.subr.mxu0 %v441
      %516 = vmatpush1.msra.mxu0 %v440
      %517 = vmatprep.subr.mxu0 %v443
      %518 = vmatpush1.msra.mxu0 %v442
      %519 = vmatprep.subr.mxu0 %v445
      %520 = vmatpush1.msra.mxu0 %v444
      %521 = vmatprep.subr.mxu0 %v447
      %522 = vmatpush1.msra.mxu0 %v446
      %523 = vmatprep.mubr.f32.mxu0 %v456
      %524 = vmatmul.mubr.f32.gmra.mrb[0].mxu0 %v455
      %v525 = vpop.f32.mrb[0].mxu0
      %v526 = vadd.f32 0.0, %v525
      %v527 = vpop.f32.mrb[0].mxu0
      %v528 = vadd.f32 0.0, %v527
      %529 = vdwg.mxu0
      %v530 = vld [vmem:[%s4] sm:$0xff]
      %v531 = vld [vmem:[%s4 + $0x8] sm:$0xff]
      %v532 = vld [vmem:[%s4 + $0x10] sm:$0xff]
      %v533 = vld [vmem:[%s4 + $0x18] sm:$0xff]
      %v534 = vld [vmem:[%s4 + $0x20] sm:$0xff]
      %v535 = vld [vmem:[%s4 + $0x28] sm:$0xff]
      %v536 = vld [vmem:[%s4 + $0x30] sm:$0xff]
      %v537 = vld [vmem:[%s4 + $0x38] sm:$0xff]
      %v538 = vld [vmem:[%s4 + $0x40] sm:$0xff]
      %v539 = vld [vmem:[%s4 + $0x48] sm:$0xff]
      %v540 = vld [vmem:[%s4 + $0x50] sm:$0xff]
      %v541 = vld [vmem:[%s4 + $0x58] sm:$0xff]
      %v542 = vld [vmem:[%s4 + $0x60] sm:$0xff]
      %v543 = vld [vmem:[%s4 + $0x68] sm:$0xff]
      %v544 = vld [vmem:[%s4 + $0x70] sm:$0xff]
      %v545 = vld [vmem:[%s4 + $0x78] sm:$0xff]
      %v546 = vld [vmem:[%s4 + $0x80] sm:$0xff]
      %v547 = vld [vmem:[%s4 + $0x88] sm:$0xff]
      %v548 = vld [vmem:[%s4 + $0x90] sm:$0xff]
      %v549 = vld [vmem:[%s4 + $0x98] sm:$0xff]
      %v550 = vld [vmem:[%s4 + $0xa0] sm:$0xff]
      %v551 = vld [vmem:[%s4 + $0xa8] sm:$0xff]
      %v552 = vld [vmem:[%s4 + $0xb0] sm:$0xff]
      %v553 = vld [vmem:[%s4 + $0xb8] sm:$0xff]
      %v554 = vld [vmem:[%s4 + $0xc0] sm:$0xff]
      %v555 = vld [vmem:[%s4 + $0xc8] sm:$0xff]
      %v556 = vld [vmem:[%s4 + $0xd0] sm:$0xff]
      %v557 = vld [vmem:[%s4 + $0xd8] sm:$0xff]
      %v558 = vld [vmem:[%s4 + $0xe0] sm:$0xff]
      %v559 = vld [vmem:[%s4 + $0xe8] sm:$0xff]
      %v560 = vld [vmem:[%s4 + $0xf0] sm:$0xff]
      %v561 = vld [vmem:[%s4 + $0xf8] sm:$0xff]
      %v562 = vld [vmem:[%s4 + $0x100] sm:$0xff]
      %v563 = vld [vmem:[%s4 + $0x108] sm:$0xff]
      %v564 = vld [vmem:[%s4 + $0x110] sm:$0xff]
      %v565 = vld [vmem:[%s4 + $0x118] sm:$0xff]
      %v566 = vld [vmem:[%s4 + $0x120] sm:$0xff]
      %v567 = vld [vmem:[%s4 + $0x128] sm:$0xff]
      %v568 = vld [vmem:[%s4 + $0x130] sm:$0xff]
      %v569 = vld [vmem:[%s4 + $0x138] sm:$0xff]
      %v570 = vld [vmem:[%s4 + $0x140] sm:$0xff]
      %v571 = vld [vmem:[%s4 + $0x148] sm:$0xff]
      %v572 = vld [vmem:[%s4 + $0x150] sm:$0xff]
      %v573 = vld [vmem:[%s4 + $0x158] sm:$0xff]
      %v574 = vld [vmem:[%s4 + $0x160] sm:$0xff]
      %v575 = vld [vmem:[%s4 + $0x168] sm:$0xff]
      %v576 = vld [vmem:[%s4 + $0x170] sm:$0xff]
      %v577 = vld [vmem:[%s4 + $0x178] sm:$0xff]
      %v578 = vld [vmem:[%s4 + $0x180] sm:$0xff]
      %v579 = vld [vmem:[%s4 + $0x188] sm:$0xff]
      %v580 = vld [vmem:[%s4 + $0x190] sm:$0xff]
      %v581 = vld [vmem:[%s4 + $0x198] sm:$0xff]
      %v582 = vld [vmem:[%s4 + $0x1a0] sm:$0xff]
      %v583 = vld [vmem:[%s4 + $0x1a8] sm:$0xff]
      %v584 = vld [vmem:[%s4 + $0x1b0] sm:$0xff]
      %v585 = vld [vmem:[%s4 + $0x1b8] sm:$0xff]
      %v586 = vld [vmem:[%s4 + $0x1c0] sm:$0xff]
      %v587 = vld [vmem:[%s4 + $0x1c8] sm:$0xff]
      %v588 = vld [vmem:[%s4 + $0x1d0] sm:$0xff]
      %v589 = vld [vmem:[%s4 + $0x1d8] sm:$0xff]
      %v590 = vld [vmem:[%s4 + $0x1e0] sm:$0xff]
      %v591 = vld [vmem:[%s4 + $0x1e8] sm:$0xff]
      %v592 = vld [vmem:[%s4 + $0x1f0] sm:$0xff]
      %v593 = vld [vmem:[%s4 + $0x1f8] sm:$0xff]
      %594 = vmatprep.subr.mxu0 %v531
      %595 = vmatpush1.msra.mxu0 %v530
      %596 = vmatprep.subr.mxu0 %v533
      %597 = vmatpush1.msra.mxu0 %v532
      %598 = vmatprep.subr.mxu0 %v535
      %599 = vmatpush1.msra.mxu0 %v534
      %600 = vmatprep.subr.mxu0 %v537
      %601 = vmatpush1.msra.mxu0 %v536
      %602 = vmatprep.subr.mxu0 %v539
      %603 = vmatpush1.msra.mxu0 %v538
      %604 = vmatprep.subr.mxu0 %v541
      %605 = vmatpush1.msra.mxu0 %v540
      %606 = vmatprep.subr.mxu0 %v543
      %607 = vmatpush1.msra.mxu0 %v542
      %608 = vmatprep.subr.mxu0 %v545
      %609 = vmatpush1.msra.mxu0 %v544
      %610 = vmatprep.subr.mxu0 %v547
      %611 = vmatpush1.msra.mxu0 %v546
      %612 = vmatprep.subr.mxu0 %v549
      %613 = vmatpush1.msra.mxu0 %v548
      %614 = vmatprep.subr.mxu0 %v551
      %615 = vmatpush1.msra.mxu0 %v550
      %616 = vmatprep.subr.mxu0 %v553
      %617 = vmatpush1.msra.mxu0 %v552
      %618 = vmatprep.subr.mxu0 %v555
      %619 = vmatpush1.msra.mxu0 %v554
      %620 = vmatprep.subr.mxu0 %v557
      %621 = vmatpush1.msra.mxu0 %v556
      %622 = vmatprep.subr.mxu0 %v559
      %623 = vmatpush1.msra.mxu0 %v558
      %624 = vmatprep.subr.mxu0 %v561
      %625 = vmatpush1.msra.mxu0 %v560
      %626 = vmatprep.subr.mxu0 %v563
      %627 = vmatpush1.msra.mxu0 %v562
      %628 = vmatprep.subr.mxu0 %v565
      %629 = vmatpush1.msra.mxu0 %v564
      %630 = vmatprep.subr.mxu0 %v567
      %631 = vmatpush1.msra.mxu0 %v566
      %632 = vmatprep.subr.mxu0 %v569
      %633 = vmatpush1.msra.mxu0 %v568
      %634 = vmatprep.subr.mxu0 %v571
      %635 = vmatpush1.msra.mxu0 %v570
      %636 = vmatprep.subr.mxu0 %v573
      %637 = vmatpush1.msra.mxu0 %v572
      %638 = vmatprep.subr.mxu0 %v575
      %639 = vmatpush1.msra.mxu0 %v574
      %640 = vmatprep.subr.mxu0 %v577
      %641 = vmatpush1.msra.mxu0 %v576
      %642 = vmatprep.subr.mxu0 %v579
      %643 = vmatpush1.msra.mxu0 %v578
      %644 = vmatprep.subr.mxu0 %v581
      %645 = vmatpush1.msra.mxu0 %v580
      %646 = vmatprep.subr.mxu0 %v583
      %647 = vmatpush1.msra.mxu0 %v582
      %648 = vmatprep.subr.mxu0 %v585
      %649 = vmatpush1.msra.mxu0 %v584
      %650 = vmatprep.subr.mxu0 %v587
      %651 = vmatpush1.msra.mxu0 %v586
      %652 = vmatprep.subr.mxu0 %v589
      %653 = vmatpush1.msra.mxu0 %v588
      %654 = vmatprep.subr.mxu0 %v591
      %655 = vmatpush1.msra.mxu0 %v590
      %656 = vmatprep.subr.mxu0 %v593
      %657 = vmatpush1.msra.mxu0 %v592
      %658 = vmatprep.mubr.f32.mxu0 %v456
      %659 = vmatmul.mubr.f32.gmra.mrb[0].mxu0 %v455
      %v660 = vpop.f32.mrb[0].mxu0
      %v661 = vadd.f32 0.0, %v660
      %v662 = vpop.f32.mrb[0].mxu0
      %v663 = vadd.f32 0.0, %v662
      %664 = vdwg.mxu0
      %v665 = vld [vmem:[%s5] sm:$0xf]
      %v666 = vld [vmem:[%s6] sm:$0xf]
      %vm667 = vcmask 15360
      %v669 = vsel %vm667, %v666, 0
      %vm671 = vcmask 1041408
      %v673 = vsel %vm671, %v661, 0
      %v676 = vsel %vm671, %v663, 0
      %678 = vmatprep.subr.mxu0 %v676
      %679 = vmatpush1.msra.mxu0 %v673
      %680 = vmatprep.subr.mxu0 0.0
      %681 = vmatpush1.msra.mxu0 0.0
      %682 = vmatprep.subr.mxu0 0.0
      %683 = vmatpush1.msra.mxu0 0.0
      %684 = vmatprep.subr.mxu0 0.0
      %685 = vmatpush1.msra.mxu0 0.0
      %686 = vmatprep.subr.mxu0 0.0
      %687 = vmatpush1.msra.mxu0 0.0
      %688 = vmatprep.subr.mxu0 0.0
      %689 = vmatpush1.msra.mxu0 0.0
      %690 = vmatprep.subr.mxu0 0.0
      %691 = vmatpush1.msra.mxu0 0.0
      %692 = vmatprep.subr.mxu0 0.0
      %693 = vmatpush1.msra.mxu0 0.0
      %694 = vmatprep.subr.mxu0 0.0
      %695 = vmatpush1.msra.mxu0 0.0
      %696 = vmatprep.subr.mxu0 0.0
      %697 = vmatpush1.msra.mxu0 0.0
      %698 = vmatprep.subr.mxu0 0.0
      %699 = vmatpush1.msra.mxu0 0.0
      %700 = vmatprep.subr.mxu0 0.0
      %701 = vmatpush1.msra.mxu0 0.0
      %702 = vmatprep.subr.mxu0 0.0
      %703 = vmatpush1.msra.mxu0 0.0
      %704 = vmatprep.subr.mxu0 0.0
      %705 = vmatpush1.msra.mxu0 0.0
      %706 = vmatprep.subr.mxu0 0.0
      %707 = vmatpush1.msra.mxu0 0.0
      %708 = vmatprep.subr.mxu0 0.0
      %709 = vmatpush1.msra.mxu0 0.0
      %710 = vmatprep.subr.mxu0 0.0
      %711 = vmatpush1.msra.mxu0 0.0
      %712 = vmatprep.subr.mxu0 0.0
      %713 = vmatpush1.msra.mxu0 0.0
      %714 = vmatprep.subr.mxu0 0.0
      %715 = vmatpush1.msra.mxu0 0.0
      %716 = vmatprep.subr.mxu0 0.0
      %717 = vmatpush1.msra.mxu0 0.0
      %718 = vmatprep.subr.mxu0 0.0
      %719 = vmatpush1.msra.mxu0 0.0
      %720 = vmatprep.subr.mxu0 0.0
      %721 = vmatpush1.msra.mxu0 0.0
      %722 = vmatprep.subr.mxu0 0.0
      %723 = vmatpush1.msra.mxu0 0.0
      %724 = vmatprep.subr.mxu0 0.0
      %725 = vmatpush1.msra.mxu0 0.0
      %726 = vmatprep.subr.mxu0 0.0
      %727 = vmatpush1.msra.mxu0 0.0
      %728 = vmatprep.subr.mxu0 0.0
      %729 = vmatpush1.msra.mxu0 0.0
      %730 = vmatprep.subr.mxu0 0.0
      %731 = vmatpush1.msra.mxu0 0.0
      %732 = vmatprep.subr.mxu0 0.0
      %733 = vmatpush1.msra.mxu0 0.0
      %734 = vmatprep.subr.mxu0 0.0
      %735 = vmatpush1.msra.mxu0 0.0
      %736 = vmatprep.subr.mxu0 0.0
      %737 = vmatpush1.msra.mxu0 0.0
      %738 = vmatprep.subr.mxu0 0.0
      %739 = vmatpush1.msra.mxu0 0.0
      %740 = vmatprep.subr.mxu0 0.0
      %741 = vmatpush1.msra.mxu0 0.0
      %742 = vmatprep.mubr.f32.mxu0 0.0
      %743 = vmatmul.mubr.f32.gmra.mrb[0].mxu0 %v669
      %v744 = vpop.f32.mrb[0].mxu0
      %v745 = vadd.f32 0.0, %v744
      %v746 = vpop.f32.mrb[0].mxu0
      %v747 = vadd.f32 0.0, %v746
      %748 = vdwg.mxu0
      %v750 = vsel %vm667, %v665, 0
      %v753 = vsel %vm671, %v526, 0
      %v756 = vsel %vm671, %v528, 0
      %758 = vmatprep.subr.mxu0 %v756
      %759 = vmatpush1.msra.mxu0 %v753
      %760 = vmatprep.subr.mxu0 0.0
      %761 = vmatpush1.msra.mxu0 0.0
      %762 = vmatprep.subr.mxu0 0.0
      %763 = vmatpush1.msra.mxu0 0.0
      %764 = vmatprep.subr.mxu0 0.0
      %765 = vmatpush1.msra.mxu0 0.0
      %766 = vmatprep.subr.mxu0 0.0
      %767 = vmatpush1.msra.mxu0 0.0
      %768 = vmatprep.subr.mxu0 0.0
      %769 = vmatpush1.msra.mxu0 0.0
      %770 = vmatprep.subr.mxu0 0.0
      %771 = vmatpush1.msra.mxu0 0.0
      %772 = vmatprep.subr.mxu0 0.0
      %773 = vmatpush1.msra.mxu0 0.0
      %774 = vmatprep.subr.mxu0 0.0
      %775 = vmatpush1.msra.mxu0 0.0
      %776 = vmatprep.subr.mxu0 0.0
      %777 = vmatpush1.msra.mxu0 0.0
      %778 = vmatprep.subr.mxu0 0.0
      %779 = vmatpush1.msra.mxu0 0.0
      %780 = vmatprep.subr.mxu0 0.0
      %781 = vmatpush1.msra.mxu0 0.0
      %782 = vmatprep.subr.mxu0 0.0
      %783 = vmatpush1.msra.mxu0 0.0
      %784 = vmatprep.subr.mxu0 0.0
      %785 = vmatpush1.msra.mxu0 0.0
      %786 = vmatprep.subr.mxu0 0.0
      %787 = vmatpush1.msra.mxu0 0.0
      %788 = vmatprep.subr.mxu0 0.0
      %789 = vmatpush1.msra.mxu0 0.0
      %790 = vmatprep.subr.mxu0 0.0
      %791 = vmatpush1.msra.mxu0 0.0
      %792 = vmatprep.subr.mxu0 0.0
      %793 = vmatpush1.msra.mxu0 0.0
      %794 = vmatprep.subr.mxu0 0.0
      %795 = vmatpush1.msra.mxu0 0.0
      %796 = vmatprep.subr.mxu0 0.0
      %797 = vmatpush1.msra.mxu0 0.0
      %798 = vmatprep.subr.mxu0 0.0
      %799 = vmatpush1.msra.mxu0 0.0
      %800 = vmatprep.subr.mxu0 0.0
      %801 = vmatpush1.msra.mxu0 0.0
      %802 = vmatprep.subr.mxu0 0.0
      %803 = vmatpush1.msra.mxu0 0.0
      %804 = vmatprep.subr.mxu0 0.0
      %805 = vmatpush1.msra.mxu0 0.0
      %806 = vmatprep.subr.mxu0 0.0
      %807 = vmatpush1.msra.mxu0 0.0
      %808 = vmatprep.subr.mxu0 0.0
      %809 = vmatpush1.msra.mxu0 0.0
      %810 = vmatprep.subr.mxu0 0.0
      %811 = vmatpush1.msra.mxu0 0.0
      %812 = vmatprep.subr.mxu0 0.0
      %813 = vmatpush1.msra.mxu0 0.0
      %814 = vmatprep.subr.mxu0 0.0
      %815 = vmatpush1.msra.mxu0 0.0
      %816 = vmatprep.subr.mxu0 0.0
      %817 = vmatpush1.msra.mxu0 0.0
      %818 = vmatprep.subr.mxu0 0.0
      %819 = vmatpush1.msra.mxu0 0.0
      %820 = vmatprep.subr.mxu0 0.0
      %821 = vmatpush1.msra.mxu0 0.0
      %822 = vmatprep.mubr.f32.mxu0 0.0
      %823 = vmatmul.mubr.f32.gmra.mrb[0].mxu0 %v750
      %v824 = vpop.f32.mrb[0].mxu0
      %v825 = vadd.f32 %v745, %v824
      %v826 = vpop.f32.mrb[0].mxu0
      %v827 = vadd.f32 %v747, %v826
      %828 = vdwg.mxu0
      %v831 = vcombine.low %v825, %v827
      %vm833 = vcmask 1043456
      %vm834 = vcmask 130052
      %vm835 = vmor %vm834, %vm833
      %836 = vst.msk [vmem:[%s345] sm:$0xff] %vm835, %v831
      %v837 = vsel %vm833, %v825, 0.0
      %vm838 = vcmask 125952
      %v839 = vsel %vm838, %v827, 0.0
      %v840 = vadd.f32 %v837, %v839
      %841 = vadd.xlane.f32.xlu0 %v840
      %v842 = vpop.xlane.xlu0 %841
      %vm843 = vcmask 3072
      %844 = vst.msk [vmem:[%s349] sm:$0xf] %vm843, %v842
      %v845 = vmul.f32 %v825, %v825
      %v846 = vmul.f32 %v827, %v827
      %v847 = vsel %vm833, %v845, 0.0
      %v848 = vsel %vm838, %v846, 0.0
      %v849 = vadd.f32 %v847, %v848
      %850 = vadd.xlane.f32.xlu0 %v849
      %v851 = vpop.xlane.xlu0 %850
      %852 = vst.msk [vmem:[%s353] sm:$0xf] %vm843, %v851
      %p853 = scmp.lt.s32.totalorder %s21, 1
      %s854 = scalar_select %p853, %s21, 1
      %s855 = smul.addr %s854, 2
      %s856 = smul.addr %s855, 4
      %s857 = scalar_lea.vmem %s7, %s856
      %p858 = scmp.lt.s32.totalorder %s21, 1
      %s859 = scalar_select %p858, %s21, 1
      %s860 = smul.addr %s859, 4
      %s861 = scalar_lea.vmem %s8, %s860
      %p862 = scmp.lt.s32.totalorder %s21, 1
      %s863 = scalar_select %p862, %s21, 1
      %s864 = smul.addr %s863, 4
      %s865 = scalar_lea.vmem %s9, %s864
      // Predicated region
      $region49: #{ffc_forward.4} parent=47 // pred_check
        %p866 = pneg %p191
      $region50: #{ffc_forward.4} parent=47 // pred_check_branch
        %868 = sbr.rel (%p866) target = $region52
      $region51: #{ffc_forward.4} parent=47 // pred_region
        _
      $region52: #{ffc_forward.4} parent=47 // pred_fallthru
        _
      // Predicated region
      $region53: #{ffc_forward.4} parent=47 // pred_check
        %p869 = pneg %p217
      $region54: #{ffc_forward.4} parent=47 // pred_check_branch
        %871 = sbr.rel (%p869) target = $region56
      $region55: #{ffc_forward.4} parent=47 // pred_region
        _
      $region56: #{ffc_forward.4} parent=47 // pred_fallthru
        _
      // Predicated region
      $region57: #{ffc_forward.4} parent=47 // pred_check
        %p872 = pneg %p243
      $region58: #{ffc_forward.4} parent=47 // pred_check_branch
        %874 = sbr.rel (%p872) target = $region60
      $region59: #{ffc_forward.4} parent=47 // pred_region
        _
      $region60: #{ffc_forward.4} parent=47 // pred_fallthru
        _
    $region48: #{ffc_forward.4} parent=5 // pred_fallthru
      _
    %p875 = scmp.le.s32.totalorder 2, %s16
    // Predicated region
    $region61: #{ffc_forward.4} parent=5 // pred_check
      %p876 = pneg %p875
    $region62: #{ffc_forward.4} parent=5 // pred_check_branch
      %878 = sbr.rel (%p876) target = $region64
    $region63: #{ffc_forward.4} parent=5 // pred_region
      %s879 = ssub.s32 %s16, 2
      // Predicated region
      $region65: #{ffc_forward.4} parent=63 // pred_check
        %p880 = pneg %p197
      $region66: #{ffc_forward.4} parent=63 // pred_check_branch
        %882 = sbr.rel (%p880) target = $region68
      $region67: #{ffc_forward.4} parent=63 // pred_region
        %p883 = scmp.lt.s32.totalorder %s22, 1
        %s884 = scalar_select %p883, %s22, 1
        %s885 = smul.addr %s884, 2
        %s886 = smul.addr %s885, 4
        %s887 = scalar_lea.vmem %s7, %s886
      $region68: #{ffc_forward.4} parent=63 // pred_fallthru
        _
      // Predicated region
      $region69: #{ffc_forward.4} parent=63 // pred_check
        %p888 = pneg %p223
      $region70: #{ffc_forward.4} parent=63 // pred_check_branch
        %890 = sbr.rel (%p888) target = $region72
      $region71: #{ffc_forward.4} parent=63 // pred_region
        %p891 = scmp.lt.s32.totalorder %s22, 1
        %s892 = scalar_select %p891, %s22, 1
        %s893 = smul.addr %s892, 4
        %s894 = scalar_lea.vmem %s8, %s893
      $region72: #{ffc_forward.4} parent=63 // pred_fallthru
        _
      // Predicated region
      $region73: #{ffc_forward.4} parent=63 // pred_check
        %p895 = pneg %p249
      $region74: #{ffc_forward.4} parent=63 // pred_check_branch
        %897 = sbr.rel (%p895) target = $region76
      $region75: #{ffc_forward.4} parent=63 // pred_region
        %p898 = scmp.lt.s32.totalorder %s22, 1
        %s899 = scalar_select %p898, %s22, 1
        %s900 = smul.addr %s899, 4
        %s901 = scalar_lea.vmem %s9, %s900
      $region76: #{ffc_forward.4} parent=63 // pred_fallthru
        _
    $region64: #{ffc_forward.4} parent=5 // pred_fallthru
      _
  $region6: #{ffc_forward.4} parent=0 // loop_footer
    %s20 = sadd.s32 1, %s16
  $region7: #{ffc_forward.4} parent=0 // loop_footer_branch
    %15 = sbr.rel target = $region3
  $region8: #{ffc_forward.4} parent=0 // loop_exit
    _

// kernel: ffc_forward.5
$region0: #{ffc_forward.5}
  #allocation0 [shape = 'u32[]', space=smem, size = 0x4, offset = 0x4, fixed_abs, tag = 'smem constant byte address 0x4 - core index']
  #allocation1 [shape = 'u32[144,128]{1,0:T(1,128)}', space=vmem, size = 0x12000, scoped, tag = 'internal scratch']
  %s0 = inlined_call_operand.vmem [shape: f32[2,8,256], index: 0, kind: input, shape index: {}]
  %s1 = inlined_call_operand.vmem [shape: f32[2,2,256], index: 1, kind: input, shape index: {}]
  %s2 = inlined_call_operand.vmem [shape: f32[2,1], index: 2, kind: input, shape index: {}]
  %s3 = inlined_call_operand.vmem [shape: f32[2,1], index: 3, kind: input, shape index: {}]
  %s4 = inlined_call_operand.vmem [shape: f32[2,4,144], index: 4, kind: input, shape index: {}]
  %s5 = inlined_call_operand.vmem [shape: f32[4,1], index: 5, kind: input, shape index: {}]
  %s6 = inlined_call_operand.vmem [shape: f32[4,1], index: 6, kind: input, shape index: {}]
  %s7 = inlined_call_operand.vmem [shape: f32[144,256], index: 7, kind: input, shape index: {}]
  %s8 = inlined_call_operand.vmem [shape: f32[144,256], index: 8, kind: input, shape index: {}]
  %s9 = inlined_call_operand.vmem [shape: f32[4,2], index: 9, kind: input, shape index: {}]
  %s10 = inlined_call_operand.vmem [shape: f32[4,4], index: 10, kind: input, shape index: {}]
  %s11 = inlined_call_operand.vmem [shape: f32[2,4,256], index: 11, kind: output, shape index: {}]
  %s12 = sld [smem:[#allocation0]]
  $region77: #{ffc_forward.5} parent=0
    _
  %s14 = ssub.s32 1, %s12
  %s15 = scalar_select 0, %s14, %s12
  loop: start=0, step=1, limit=4
  $region2: #{ffc_forward.5} parent=0 // loop_pre_header
    _
  $region3: #{ffc_forward.5} parent=0 // loop_header
    %s17 = sphi 0, %s21
    %p18 = scmp.ge.s32.totalorder %s17, 4
    %s27 = sphi 0, %s29
    %s30 = sphi 0, %s27
    %s31 = sphi 0, %s30
    %s47 = sphi 0, %s31
    %s53 = sphi 0, %s55
    %s56 = sphi 0, %s53
    %s57 = sphi 0, %s56
    %s73 = sphi 0, %s57
    %s77 = sphi 0, %s77
    %s79 = sphi 0, %s77
    %s80 = sphi 0, %s79
    %s94 = sphi 0, %s80
    %s98 = sphi 0, %s98
    %s100 = sphi 0, %s98
    %s101 = sphi 0, %s100
    %s115 = sphi 0, %s101
    %s121 = sphi 0, %s123
    %s124 = sphi 0, %s121
    %s125 = sphi 0, %s124
    %s141 = sphi 0, %s125
    %s145 = sphi 0, %s145
    %s147 = sphi 0, %s145
    %s148 = sphi 0, %s147
    %s162 = sphi 0, %s148
    %s166 = sphi 0, %s166
    %s168 = sphi 0, %s166
    %s169 = sphi 0, %s168
    %s183 = sphi 0, %s169
    %s187 = sphi 0, %s187
    %s189 = sphi 0, %s187
    %s190 = sphi 0, %s189
    %s204 = sphi 0, %s190
    %s208 = sphi 0, %s208
    %s210 = sphi 0, %s208
    %s211 = sphi 0, %s210
    %s225 = sphi 0, %s211
    %s229 = sphi 0, %s229
    %s231 = sphi 0, %s229
    %s232 = sphi 0, %s231
    %s246 = sphi 0, %s232
    %s250 = sphi 0, %s250
    %s252 = sphi 0, %s250
    %s253 = sphi 0, %s252
    %s267 = sphi 0, %s253
    %s273 = sphi 0, %s275
    %s276 = sphi 0, %s273
    %s277 = sphi 0, %s276
    %s293 = sphi 0, %s277
  $region4: #{ffc_forward.5} parent=0 // loop_header_branch
    %20 = sbr.rel (%p18) target = $region8
  $region5: #{ffc_forward.5} parent=0 // loop_body
    %s22 = ssub.s32 %s17, 1
    %s23 = ssub.s32 %s17, 2
    %s24 = sadd.s32 %s17, 1
    %s25 = ssub.s32 %s17, %s24
    %p26 = scmp.eq.s32.totalorder %s25, 0
    %s28 = sadd.s32 %s27, 1
    %s29 = scalar_select %p26, %s27, %s28
    %p32 = pneg %p26
    %p33 = scmp.eq.s32.totalorder %s17, 1
    %p34 = por %p32, %p33
    %p35 = scmp.ne.s32.totalorder %s27, %s30
    %p36 = scmp.eq.s32.totalorder %s17, 0
    %p37 = por %p35, %p36
    %p38 = scmp.ne.s32.totalorder %s27, %s30
    %p39 = scmp.eq.s32.totalorder %s22, 1
    %p40 = por %p38, %p39
    %p41 = scmp.ne.s32.totalorder %s30, %s31
    %p42 = scmp.eq.s32.totalorder %s22, 0
    %p43 = por %p41, %p42
    %p44 = scmp.ne.s32.totalorder %s30, %s31
    %p45 = scmp.eq.s32.totalorder %s23, 1
    %p46 = por %p44, %p45
    %p48 = scmp.ne.s32.totalorder %s31, %s47
    %p49 = scmp.eq.s32.totalorder %s23, 0
    %p50 = por %p48, %p49
    %s51 = ssub.s32 %s17, %s24
    %p52 = scmp.eq.s32.totalorder %s51, 0
    %s54 = sadd.s32 %s53, 1
    %s55 = scalar_select %p52, %s53, %s54
    %p58 = pneg %p52
    %p59 = scmp.eq.s32.totalorder %s17, 1
    %p60 = por %p58, %p59
    %p61 = scmp.ne.s32.totalorder %s53, %s56
    %p62 = scmp.eq.s32.totalorder %s17, 0
    %p63 = por %p61, %p62
    %p64 = scmp.ne.s32.totalorder %s53, %s56
    %p65 = scmp.eq.s32.totalorder %s22, 1
    %p66 = por %p64, %p65
    %p67 = scmp.ne.s32.totalorder %s56, %s57
    %p68 = scmp.eq.s32.totalorder %s22, 0
    %p69 = por %p67, %p68
    %p70 = scmp.ne.s32.totalorder %s56, %s57
    %p71 = scmp.eq.s32.totalorder %s23, 1
    %p72 = por %p70, %p71
    %p74 = scmp.ne.s32.totalorder %s57, %s73
    %p75 = scmp.eq.s32.totalorder %s23, 0
    %p76 = por %p74, %p75
    %s78 = sadd.s32 %s77, 1
    %p81 = scmp.eq.s32.totalorder %s17, 1
    %p82 = scmp.ne.s32.totalorder %s77, %s79
    %p83 = scmp.eq.s32.totalorder %s17, 0
    %p84 = por %p82, %p83
    %p85 = scmp.ne.s32.totalorder %s77, %s79
    %p86 = scmp.eq.s32.totalorder %s22, 1
    %p87 = por %p85, %p86
    %p88 = scmp.ne.s32.totalorder %s79, %s80
    %p89 = scmp.eq.s32.totalorder %s22, 0
    %p90 = por %p88, %p89
    %p91 = scmp.ne.s32.totalorder %s79, %s80
    %p92 = scmp.eq.s32.totalorder %s23, 1
    %p93 = por %p91, %p92
    %p95 = scmp.ne.s32.totalorder %s80, %s94
    %p96 = scmp.eq.s32.totalorder %s23, 0
    %p97 = por %p95, %p96
    %s99 = sadd.s32 %s98, 1
    %p102 = scmp.eq.s32.totalorder %s17, 1
    %p103 = scmp.ne.s32.totalorder %s98, %s100
    %p104 = scmp.eq.s32.totalorder %s17, 0
    %p105 = por %p103, %p104
    %p106 = scmp.ne.s32.totalorder %s98, %s100
    %p107 = scmp.eq.s32.totalorder %s22, 1
    %p108 = por %p106, %p107
    %p109 = scmp.ne.s32.totalorder %s100, %s101
    %p110 = scmp.eq.s32.totalorder %s22, 0
    %p111 = por %p109, %p110
    %p112 = scmp.ne.s32.totalorder %s100, %s101
    %p113 = scmp.eq.s32.totalorder %s23, 1
    %p114 = por %p112, %p113
    %p116 = scmp.ne.s32.totalorder %s101, %s115
    %p117 = scmp.eq.s32.totalorder %s23, 0
    %p118 = por %p116, %p117
    %s119 = ssub.s32 %s17, %s24
    %p120 = scmp.eq.s32.totalorder %s119, 0
    %s122 = sadd.s32 %s121, 1
    %s123 = scalar_select %p120, %s121, %s122
    %p126 = pneg %p120
    %p127 = scmp.eq.s32.totalorder %s17, 1
    %p128 = por %p126, %p127
    %p129 = scmp.ne.s32.totalorder %s121, %s124
    %p130 = scmp.eq.s32.totalorder %s17, 0
    %p131 = por %p129, %p130
    %p132 = scmp.ne.s32.totalorder %s121, %s124
    %p133 = scmp.eq.s32.totalorder %s22, 1
    %p134 = por %p132, %p133
    %p135 = scmp.ne.s32.totalorder %s124, %s125
    %p136 = scmp.eq.s32.totalorder %s22, 0
    %p137 = por %p135, %p136
    %p138 = scmp.ne.s32.totalorder %s124, %s125
    %p139 = scmp.eq.s32.totalorder %s23, 1
    %p140 = por %p138, %p139
    %p142 = scmp.ne.s32.totalorder %s125, %s141
    %p143 = scmp.eq.s32.totalorder %s23, 0
    %p144 = por %p142, %p143
    %s146 = sadd.s32 %s145, 1
    %p149 = scmp.eq.s32.totalorder %s17, 1
    %p150 = scmp.ne.s32.totalorder %s145, %s147
    %p151 = scmp.eq.s32.totalorder %s17, 0
    %p152 = por %p150, %p151
    %p153 = scmp.ne.s32.totalorder %s145, %s147
    %p154 = scmp.eq.s32.totalorder %s22, 1
    %p155 = por %p153, %p154
    %p156 = scmp.ne.s32.totalorder %s147, %s148
    %p157 = scmp.eq.s32.totalorder %s22, 0
    %p158 = por %p156, %p157
    %p159 = scmp.ne.s32.totalorder %s147, %s148
    %p160 = scmp.eq.s32.totalorder %s23, 1
    %p161 = por %p159, %p160
    %p163 = scmp.ne.s32.totalorder %s148, %s162
    %p164 = scmp.eq.s32.totalorder %s23, 0
    %p165 = por %p163, %p164
    %s167 = sadd.s32 %s166, 1
    %p170 = scmp.eq.s32.totalorder %s17, 1
    %p171 = scmp.ne.s32.totalorder %s166, %s168
    %p172 = scmp.eq.s32.totalorder %s17, 0
    %p173 = por %p171, %p172
    %p174 = scmp.ne.s32.totalorder %s166, %s168
    %p175 = scmp.eq.s32.totalorder %s22, 1
    %p176 = por %p174, %p175
    %p177 = scmp.ne.s32.totalorder %s168, %s169
    %p178 = scmp.eq.s32.totalorder %s22, 0
    %p179 = por %p177, %p178
    %p180 = scmp.ne.s32.totalorder %s168, %s169
    %p181 = scmp.eq.s32.totalorder %s23, 1
    %p182 = por %p180, %p181
    %p184 = scmp.ne.s32.totalorder %s169, %s183
    %p185 = scmp.eq.s32.totalorder %s23, 0
    %p186 = por %p184, %p185
    %s188 = sadd.s32 %s187, 1
    %p191 = scmp.eq.s32.totalorder %s17, 1
    %p192 = scmp.ne.s32.totalorder %s187, %s189
    %p193 = scmp.eq.s32.totalorder %s17, 0
    %p194 = por %p192, %p193
    %p195 = scmp.ne.s32.totalorder %s187, %s189
    %p196 = scmp.eq.s32.totalorder %s22, 1
    %p197 = por %p195, %p196
    %p198 = scmp.ne.s32.totalorder %s189, %s190
    %p199 = scmp.eq.s32.totalorder %s22, 0
    %p200 = por %p198, %p199
    %p201 = scmp.ne.s32.totalorder %s189, %s190
    %p202 = scmp.eq.s32.totalorder %s23, 1
    %p203 = por %p201, %p202
    %p205 = scmp.ne.s32.totalorder %s190, %s204
    %p206 = scmp.eq.s32.totalorder %s23, 0
    %p207 = por %p205, %p206
    %s209 = sadd.s32 %s208, 1
    %p212 = scmp.eq.s32.totalorder %s17, 1
    %p213 = scmp.ne.s32.totalorder %s208, %s210
    %p214 = scmp.eq.s32.totalorder %s17, 0
    %p215 = por %p213, %p214
    %p216 = scmp.ne.s32.totalorder %s208, %s210
    %p217 = scmp.eq.s32.totalorder %s22, 1
    %p218 = por %p216, %p217
    %p219 = scmp.ne.s32.totalorder %s210, %s211
    %p220 = scmp.eq.s32.totalorder %s22, 0
    %p221 = por %p219, %p220
    %p222 = scmp.ne.s32.totalorder %s210, %s211
    %p223 = scmp.eq.s32.totalorder %s23, 1
    %p224 = por %p222, %p223
    %p226 = scmp.ne.s32.totalorder %s211, %s225
    %p227 = scmp.eq.s32.totalorder %s23, 0
    %p228 = por %p226, %p227
    %s230 = sadd.s32 %s229, 1
    %p233 = scmp.eq.s32.totalorder %s17, 1
    %p234 = scmp.ne.s32.totalorder %s229, %s231
    %p235 = scmp.eq.s32.totalorder %s17, 0
    %p236 = por %p234, %p235
    %p237 = scmp.ne.s32.totalorder %s229, %s231
    %p238 = scmp.eq.s32.totalorder %s22, 1
    %p239 = por %p237, %p238
    %p240 = scmp.ne.s32.totalorder %s231, %s232
    %p241 = scmp.eq.s32.totalorder %s22, 0
    %p242 = por %p240, %p241
    %p243 = scmp.ne.s32.totalorder %s231, %s232
    %p244 = scmp.eq.s32.totalorder %s23, 1
    %p245 = por %p243, %p244
    %p247 = scmp.ne.s32.totalorder %s232, %s246
    %p248 = scmp.eq.s32.totalorder %s23, 0
    %p249 = por %p247, %p248
    %s251 = sadd.s32 %s250, 1
    %p254 = scmp.eq.s32.totalorder %s17, 1
    %p255 = scmp.ne.s32.totalorder %s250, %s252
    %p256 = scmp.eq.s32.totalorder %s17, 0
    %p257 = por %p255, %p256
    %p258 = scmp.ne.s32.totalorder %s250, %s252
    %p259 = scmp.eq.s32.totalorder %s22, 1
    %p260 = por %p258, %p259
    %p261 = scmp.ne.s32.totalorder %s252, %s253
    %p262 = scmp.eq.s32.totalorder %s22, 0
    %p263 = por %p261, %p262
    %p264 = scmp.ne.s32.totalorder %s252, %s253
    %p265 = scmp.eq.s32.totalorder %s23, 1
    %p266 = por %p264, %p265
    %p268 = scmp.ne.s32.totalorder %s253, %s267
    %p269 = scmp.eq.s32.totalorder %s23, 0
    %p270 = por %p268, %p269
    %s271 = ssub.s32 %s17, %s24
    %p272 = scmp.eq.s32.totalorder %s271, 0
    %s274 = sadd.s32 %s273, 1
    %s275 = scalar_select %p272, %s273, %s274
    %p278 = pneg %p272
    %p279 = scmp.eq.s32.totalorder %s17, 1
    %p280 = por %p278, %p279
    %p281 = scmp.ne.s32.totalorder %s273, %s276
    %p282 = scmp.eq.s32.totalorder %s17, 0
    %p283 = por %p281, %p282
    %p284 = scmp.ne.s32.totalorder %s273, %s276
    %p285 = scmp.eq.s32.totalorder %s22, 1
    %p286 = por %p284, %p285
    %p287 = scmp.ne.s32.totalorder %s276, %s277
    %p288 = scmp.eq.s32.totalorder %s22, 0
    %p289 = por %p287, %p288
    %p290 = scmp.ne.s32.totalorder %s276, %s277
    %p291 = scmp.eq.s32.totalorder %s23, 1
    %p292 = por %p290, %p291
    %p294 = scmp.ne.s32.totalorder %s277, %s293
    %p295 = scmp.eq.s32.totalorder %s23, 0
    %p296 = por %p294, %p295
    %p297 = scmp.le.s32.totalorder 1, %s17
    %p298 = scmp.lt.s32.totalorder %s17, 3
    %p299 = pnand %p297, %p298
    %p300 = pneg %p299
    // Predicated region
    $region9: #{ffc_forward.5} parent=5 // pred_check
      _
    $region10: #{ffc_forward.5} parent=5 // pred_check_branch
      %302 = sbr.rel (%p299) target = $region12
    $region11: #{ffc_forward.5} parent=5 // pred_region
      %s303 = ssub.s32 %s17, 1
      // Predicated region
      $region13: #{ffc_forward.5} parent=11 // pred_check
        %p304 = pneg %p90
      $region14: #{ffc_forward.5} parent=11 // pred_check_branch
        %306 = sbr.rel (%p304) target = $region16
      $region15: #{ffc_forward.5} parent=11 // pred_region
        _
      $region16: #{ffc_forward.5} parent=11 // pred_fallthru
        _
      // Predicated region
      $region17: #{ffc_forward.5} parent=11 // pred_check
        %p307 = pneg %p111
      $region18: #{ffc_forward.5} parent=11 // pred_check_branch
        %309 = sbr.rel (%p307) target = $region20
      $region19: #{ffc_forward.5} parent=11 // pred_region
        _
      $region20: #{ffc_forward.5} parent=11 // pred_fallthru
        _
      // Predicated region
      $region21: #{ffc_forward.5} parent=11 // pred_check
        %p310 = pneg %p158
      $region22: #{ffc_forward.5} parent=11 // pred_check_branch
        %312 = sbr.rel (%p310) target = $region24
      $region23: #{ffc_forward.5} parent=11 // pred_region
        _
      $region24: #{ffc_forward.5} parent=11 // pred_fallthru
        _
      // Predicated region
      $region25: #{ffc_forward.5} parent=11 // pred_check
        %p313 = pneg %p179
      $region26: #{ffc_forward.5} parent=11 // pred_check_branch
        %315 = sbr.rel (%p313) target = $region28
      $region27: #{ffc_forward.5} parent=11 // pred_region
        _
      $region28: #{ffc_forward.5} parent=11 // pred_fallthru
        _
      // Predicated region
      $region29: #{ffc_forward.5} parent=11 // pred_check
        %p316 = pneg %p200
      $region30: #{ffc_forward.5} parent=11 // pred_check_branch
        %318 = sbr.rel (%p316) target = $region32
      $region31: #{ffc_forward.5} parent=11 // pred_region
        _
      $region32: #{ffc_forward.5} parent=11 // pred_fallthru
        _
      // Predicated region
      $region33: #{ffc_forward.5} parent=11 // pred_check
        %p319 = pneg %p221
      $region34: #{ffc_forward.5} parent=11 // pred_check_branch
        %321 = sbr.rel (%p319) target = $region36
      $region35: #{ffc_forward.5} parent=11 // pred_region
        _
      $region36: #{ffc_forward.5} parent=11 // pred_fallthru
        _
      // Predicated region
      $region37: #{ffc_forward.5} parent=11 // pred_check
        %p322 = pneg %p242
      $region38: #{ffc_forward.5} parent=11 // pred_check_branch
        %324 = sbr.rel (%p322) target = $region40
      $region39: #{ffc_forward.5} parent=11 // pred_region
        _
      $region40: #{ffc_forward.5} parent=11 // pred_fallthru
        _
      // Predicated region
      $region41: #{ffc_forward.5} parent=11 // pred_check
        %p325 = pneg %p263
      $region42: #{ffc_forward.5} parent=11 // pred_check_branch
        %327 = sbr.rel (%p325) target = $region44
      $region43: #{ffc_forward.5} parent=11 // pred_region
        _
      $region44: #{ffc_forward.5} parent=11 // pred_fallthru
        _
    $region12: #{ffc_forward.5} parent=5 // pred_fallthru
      _
    %p328 = scmp.lt.s32.totalorder %s17, 2
    // Predicated region
    $region45: #{ffc_forward.5} parent=5 // pred_check
      %p329 = pneg %p328
    $region46: #{ffc_forward.5} parent=5 // pred_check_branch
      %331 = sbr.rel (%p329) target = $region48
    $region47: #{ffc_forward.5} parent=5 // pred_region
      // Predicated region
      $region49: #{ffc_forward.5} parent=47 // pred_check
        %p332 = pneg %p37
      $region50: #{ffc_forward.5} parent=47 // pred_check_branch
        %334 = sbr.rel (%p332) target = $region52
      $region51: #{ffc_forward.5} parent=47 // pred_region
        %p335 = scmp.lt.s32.totalorder %s17, 1
        %s336 = scalar_select %p335, %s17, 1
        %s337 = smul.addr %s336, 2
        %s338 = smul.addr %s337, 8
        %s339 = scalar_lea.vmem %s0, %s338
      $region52: #{ffc_forward.5} parent=47 // pred_fallthru
        _
      // Predicated region
      $region53: #{ffc_forward.5} parent=47 // pred_check
        %p340 = pneg %p63
      $region54: #{ffc_forward.5} parent=47 // pred_check_branch
        %342 = sbr.rel (%p340) target = $region56
      $region55: #{ffc_forward.5} parent=47 // pred_region
        %p343 = scmp.lt.s32.totalorder %s17, 1
        %s344 = scalar_select %p343, %s17, 1
        %s345 = smul.addr %s344, 2
        %s346 = smul.addr %s345, 2
        %s347 = scalar_lea.vmem %s1, %s346
      $region56: #{ffc_forward.5} parent=47 // pred_fallthru
        _
      // Predicated region
      $region57: #{ffc_forward.5} parent=47 // pred_check
        %p348 = pneg %p131
      $region58: #{ffc_forward.5} parent=47 // pred_check_branch
        %350 = sbr.rel (%p348) target = $region60
      $region59: #{ffc_forward.5} parent=47 // pred_region
        %p351 = scmp.lt.s32.totalorder %s17, 1
        %s352 = scalar_select %p351, %s17, 1
        %s353 = smul.addr %s352, 2
        %s354 = smul.addr %s353, 4
        %s355 = scalar_lea.vmem %s4, %s354
      $region60: #{ffc_forward.5} parent=47 // pred_fallthru
        _
    $region48: #{ffc_forward.5} parent=5 // pred_fallthru
      _
    %p356 = scmp.le.s32.totalorder 1, %s17
    %p357 = scmp.lt.s32.totalorder %s17, 3
    %p358 = pnand %p356, %p357
    %p359 = pneg %p358
    // Predicated region
    $region61: #{ffc_forward.5} parent=5 // pred_check
      _
    $region62: #{ffc_forward.5} parent=5 // pred_check_branch
      %361 = sbr.rel (%p358) target = $region64
    $region63: #{ffc_forward.5} parent=5 // pred_region
      %s362 = ssub.s32 %s17, 1
      %p363 = scmp.lt.s32.totalorder %s22, 1
      %s364 = scalar_select %p363, %s22, 1
      %s365 = smul.addr %s364, 2
      %s366 = smul.addr %s365, 8
      %s367 = scalar_lea.vmem %s0, %s366
      %p368 = pneg %p43
      %p369 = pneg %p40
      %p370 = scmp.lt.s32.totalorder %s22, 1
      %s371 = scalar_select %p370, %s22, 1
      %s372 = smul.addr %s371, 2
      %s373 = smul.addr %s372, 2
      %s374 = scalar_lea.vmem %s1, %s373
      %p375 = pneg %p69
      %p376 = pneg %p66
      %p377 = pneg %p90
      %p378 = pneg %p87
      %p379 = pneg %p111
      %p380 = pneg %p108
      %p381 = scmp.lt.s32.totalorder %s22, 1
      %s382 = scalar_select %p381, %s22, 1
      %s383 = smul.addr %s382, 2
      %s384 = smul.addr %s383, 4
      %s385 = scalar_lea.vmem %s4, %s384
      %p386 = pneg %p137
      %p387 = pneg %p134
      %p388 = pneg %p158
      %p389 = pneg %p155
      %p390 = pneg %p179
      %p391 = pneg %p176
      %p392 = pneg %p200
      %p393 = pneg %p197
      %p394 = pneg %p221
      %p395 = pneg %p218
      %p396 = pneg %p242
      %p397 = pneg %p239
      %p398 = pneg %p263
      %p399 = pneg %p260
      %p400 = pneg %p289
      %p401 = pneg %p286
      %p402 = scmp.lt.s32.totalorder %s22, 1
      %s403 = scalar_select %p402, %s22, 1
      %s404 = smul.addr %s403, 2
      %s405 = smul.addr %s404, 4
      %s406 = scalar_lea.vmem %s11, %s405
      %p407 = scmp.lt.s32.totalorder %s22, 1
      %s408 = scalar_select %p407, %s22, 1
      %s409 = smul.addr %s408, 2
      %s410 = smul.addr %s409, 8
      %s411 = scalar_lea.vmem %s0, %s410
      %p412 = scmp.lt.s32.totalorder %s22, 1
      %s413 = scalar_select %p412, %s22, 1
      %s414 = smul.addr %s413, 2
      %s415 = smul.addr %s414, 2
      %s416 = scalar_lea.vmem %s1, %s415
      %p417 = scmp.lt.s32.totalorder %s22, 1
      %s418 = scalar_select %p417, %s22, 1
      %s419 = smul.addr %s418, 2
      %s420 = smul.addr %s419, 4
      %s421 = scalar_lea.vmem %s4, %s420
      %p422 = scmp.lt.s32.totalorder %s22, 1
      %s423 = scalar_select %p422, %s22, 1
      %s424 = smul.addr %s423, 2
      %s425 = smul.addr %s424, 4
      %s426 = scalar_lea.vmem %s11, %s425
      %v427 = vld [vmem:[%s411] sm:$0xff]
      %v428 = vld [vmem:[%s411 + $0x8] sm:$0xff]
      %v429 = vld [vmem:[%s416] sm:$0xf]
      %v430 = vld [vmem:[%s2] sm:$0x3]
      %432 = vset.pattern.permute.xlu0 0
      %433 = vperm.xlu0 %432, %v430
      %v434 = vpop.permute.xlu0 %433
      %v436 = vunpack.c.l.s4 269488144
      %v437 = vunpack.c.0.s8 %v436
      %v438 = vlaneseq
      %v439 = vshrl.u32 %v438, 7
      %v440 = vsub.s32 %v437, %v439
      %v441 = vrot.slane %v434, %v440
      %v443 = vmul.f32 %v429, %v441
      %v444 = vld [vmem:[%s3] sm:$0x3]
      %446 = vset.pattern.permute.xlu0 0
      %447 = vperm.xlu0 %446, %v444
      %v448 = vpop.permute.xlu0 %447
      %v450 = vunpack.c.l.s4 269488144
      %v451 = vunpack.c.0.s8 %v450
      %v452 = vlaneseq
      %v453 = vshrl.u32 %v452, 7
      %v454 = vsub.s32 %v451, %v453
      %v455 = vrot.slane %v448, %v454
      %v457 = vadd.f32 %v443, %v455
      %v458 = vmax.f32 %v457, 0.0
      %v459 = vld [vmem:[%s421] sm:$0xff]
      %v460 = vld [vmem:[%s5] sm:$0xf]
      %462 = vset.pattern.permute.xlu0 0
      %463 = vperm.xlu0 %462, %v460
      %v464 = vpop.permute.xlu0 %463
      %v466 = vunpack.c.l.s4 839922192
      %v467 = vunpack.c.0.s8 %v466
      %v468 = vlaneseq
      %v469 = vshrl.u32 %v468, 7
      %v470 = vsub.s32 %v467, %v469
      %v471 = vrot.slane %v464, %v470
      %v473 = vmul.f32 %v459, %v471
      %v474 = vld [vmem:[%s6] sm:$0xf]
      %476 = vset.pattern.permute.xlu0 0
      %477 = vperm.xlu0 %476, %v474
      %v478 = vpop.permute.xlu0 %477
      %v480 = vunpack.c.l.s4 839922192
      %v481 = vunpack.c.0.s8 %v480
      %v482 = vlaneseq
      %v483 = vshrl.u32 %v482, 7
      %v484 = vsub.s32 %v481, %v483
      %v485 = vrot.slane %v478, %v484
      %v487 = vadd.f32 %v473, %v485
      %v488 = vmax.f32 %v487, 0.0
      %v489 = vld [vmem:[%s7] sm:$0xff]
      %v490 = vld [vmem:[%s7 + $0x8] sm:$0xff]
      %v491 = vld [vmem:[%s7 + $0x10] sm:$0xff]
      %v492 = vld [vmem:[%s7 + $0x18] sm:$0xff]
      %v493 = vld [vmem:[%s7 + $0x20] sm:$0xff]
      %v494 = vld [vmem:[%s7 + $0x28] sm:$0xff]
      %v495 = vld [vmem:[%s7 + $0x30] sm:$0xff]
      %v496 = vld [vmem:[%s7 + $0x38] sm:$0xff]
      %v497 = vld [vmem:[%s7 + $0x40] sm:$0xff]
      %v498 = vld [vmem:[%s7 + $0x48] sm:$0xff]
      %v499 = vld [vmem:[%s7 + $0x50] sm:$0xff]
      %v500 = vld [vmem:[%s7 + $0x58] sm:$0xff]
      %v501 = vld [vmem:[%s7 + $0x60] sm:$0xff]
      %v502 = vld [vmem:[%s7 + $0x68] sm:$0xff]
      %v503 = vld [vmem:[%s7 + $0x70] sm:$0xff]
      %v504 = vld [vmem:[%s7 + $0x78] sm:$0xff]
      %v505 = vld [vmem:[%s7 + $0x80] sm:$0xff]
      %v506 = vld [vmem:[%s7 + $0x88] sm:$0xff]
      %v507 = vld [vmem:[%s7 + $0x90] sm:$0xff]
      %v508 = vld [vmem:[%s7 + $0x98] sm:$0xff]
      %v509 = vld [vmem:[%s7 + $0xa0] sm:$0xff]
      %v510 = vld [vmem:[%s7 + $0xa8] sm:$0xff]
      %v511 = vld [vmem:[%s7 + $0xb0] sm:$0xff]
      %v512 = vld [vmem:[%s7 + $0xb8] sm:$0xff]
      %v513 = vld [vmem:[%s7 + $0xc0] sm:$0xff]
      %v514 = vld [vmem:[%s7 + $0xc8] sm:$0xff]
      %v515 = vld [vmem:[%s7 + $0xd0] sm:$0xff]
      %v516 = vld [vmem:[%s7 + $0xd8] sm:$0xff]
      %v517 = vld [vmem:[%s7 + $0xe0] sm:$0xff]
      %v518 = vld [vmem:[%s7 + $0xe8] sm:$0xff]
      %v519 = vld [vmem:[%s7 + $0xf0] sm:$0xff]
      %v520 = vld [vmem:[%s7 + $0xf8] sm:$0xff]
      %v521 = vld [vmem:[%s7 + $0x100] sm:$0xff]
      %v522 = vld [vmem:[%s7 + $0x108] sm:$0xff]
      %v523 = vld [vmem:[%s7 + $0x110] sm:$0xff]
      %v524 = vld [vmem:[%s7 + $0x118] sm:$0xff]
      %v525 = vld [vmem:[%s8] sm:$0xff]
      %v526 = vld [vmem:[%s8 + $0x8] sm:$0xff]
      %v527 = vld [vmem:[%s8 + $0x10] sm:$0xff]
      %v528 = vld [vmem:[%s8 + $0x18] sm:$0xff]
      %v529 = vld [vmem:[%s8 + $0x20] sm:$0xff]
      %v530 = vld [vmem:[%s8 + $0x28] sm:$0xff]
      %v531 = vld [vmem:[%s8 + $0x30] sm:$0xff]
      %v532 = vld [vmem:[%s8 + $0x38] sm:$0xff]
      %v533 = vld [vmem:[%s8 + $0x40] sm:$0xff]
      %v534 = vld [vmem:[%s8 + $0x48] sm:$0xff]
      %v535 = vld [vmem:[%s8 + $0x50] sm:$0xff]
      %v536 = vld [vmem:[%s8 + $0x58] sm:$0xff]
      %v537 = vld [vmem:[%s8 + $0x60] sm:$0xff]
      %v538 = vld [vmem:[%s8 + $0x68] sm:$0xff]
      %v539 = vld [vmem:[%s8 + $0x70] sm:$0xff]
      %v540 = vld [vmem:[%s8 + $0x78] sm:$0xff]
      %v541 = vld [vmem:[%s8 + $0x80] sm:$0xff]
      %v542 = vld [vmem:[%s8 + $0x88] sm:$0xff]
      %v543 = vld [vmem:[%s8 + $0x90] sm:$0xff]
      %v544 = vld [vmem:[%s8 + $0x98] sm:$0xff]
      %v545 = vld [vmem:[%s8 + $0xa0] sm:$0xff]
      %v546 = vld [vmem:[%s8 + $0xa8] sm:$0xff]
      %v547 = vld [vmem:[%s8 + $0xb0] sm:$0xff]
      %v548 = vld [vmem:[%s8 + $0xb8] sm:$0xff]
      %v549 = vld [vmem:[%s8 + $0xc0] sm:$0xff]
      %v550 = vld [vmem:[%s8 + $0xc8] sm:$0xff]
      %v551 = vld [vmem:[%s8 + $0xd0] sm:$0xff]
      %v552 = vld [vmem:[%s8 + $0xd8] sm:$0xff]
      %v553 = vld [vmem:[%s8 + $0xe0] sm:$0xff]
      %v554 = vld [vmem:[%s8 + $0xe8] sm:$0xff]
      %v555 = vld [vmem:[%s8 + $0xf0] sm:$0xff]
      %v556 = vld [vmem:[%s8 + $0xf8] sm:$0xff]
      %v557 = vld [vmem:[%s8 + $0x100] sm:$0xff]
      %v558 = vld [vmem:[%s8 + $0x108] sm:$0xff]
      %v559 = vld [vmem:[%s8 + $0x110] sm:$0xff]
      %v560 = vld [vmem:[%s8 + $0x118] sm:$0xff]
      %v562 = vcombine.high %v488, %v488
      %v563 = vrot.slane %v488, 2
      %v564 = vrot.slane %v562, 2
      %vm566 = vcmask 130048
      %v567 = vsel %vm566, %v564, 0
      %569 = vmatprep.subr.mxu0 %v526
      %570 = vmatpush1.msra.mxu0 %v525
      %571 = vmatprep.subr.mxu0 %v528
      %572 = vmatpush1.msra.mxu0 %v527
      %573 = vmatprep.subr.mxu0 %v530
      %574 = vmatpush1.msra.mxu0 %v529
      %575 = vmatprep.subr.mxu0 %v532
      %576 = vmatpush1.msra.mxu0 %v531
      %577 = vmatprep.subr.mxu0 %v534
      %578 = vmatpush1.msra.mxu0 %v533
      %579 = vmatprep.subr.mxu0 %v536
      %580 = vmatpush1.msra.mxu0 %v535
      %581 = vmatprep.subr.mxu0 %v538
      %582 = vmatpush1.msra.mxu0 %v537
      %583 = vmatprep.subr.mxu0 %v540
      %584 = vmatpush1.msra.mxu0 %v539
      %585 = vmatprep.subr.mxu0 %v542
      %586 = vmatpush1.msra.mxu0 %v541
      %587 = vmatprep.subr.mxu0 %v544
      %588 = vmatpush1.msra.mxu0 %v543
      %589 = vmatprep.subr.mxu0 %v546
      %590 = vmatpush1.msra.mxu0 %v545
      %591 = vmatprep.subr.mxu0 %v548
      %592 = vmatpush1.msra.mxu0 %v547
      %593 = vmatprep.subr.mxu0 %v550
      %594 = vmatpush1.msra.mxu0 %v549
      %595 = vmatprep.subr.mxu0 %v552
      %596 = vmatpush1.msra.mxu0 %v551
      %597 = vmatprep.subr.mxu0 %v554
      %598 = vmatpush1.msra.mxu0 %v553
      %599 = vmatprep.subr.mxu0 %v556
      %600 = vmatpush1.msra.mxu0 %v555
      %601 = vmatprep.subr.mxu0 %v558
      %602 = vmatpush1.msra.mxu0 %v557
      %603 = vmatprep.subr.mxu0 %v560
      %604 = vmatpush1.msra.mxu0 %v559
      %605 = vmatprep.subr.mxu0 0.0
      %606 = vmatpush1.msra.mxu0 0.0
      %607 = vmatprep.subr.mxu0 0.0
      %608 = vmatpush1.msra.mxu0 0.0
      %609 = vmatprep.subr.mxu0 0.0
      %610 = vmatpush1.msra.mxu0 0.0
      %611 = vmatprep.subr.mxu0 0.0
      %612 = vmatpush1.msra.mxu0 0.0
      %613 = vmatprep.subr.mxu0 0.0
      %614 = vmatpush1.msra.mxu0 0.0
      %615 = vmatprep.subr.mxu0 0.0
      %616 = vmatpush1.msra.mxu0 0.0
      %617 = vmatprep.subr.mxu0 0.0
      %618 = vmatpush1.msra.mxu0 0.0
      %619 = vmatprep.subr.mxu0 0.0
      %620 = vmatpush1.msra.mxu0 0.0
      %621 = vmatprep.subr.mxu0 0.0
      %622 = vmatpush1.msra.mxu0 0.0
      %623 = vmatprep.subr.mxu0 0.0
      %624 = vmatpush1.msra.mxu0 0.0
      %625 = vmatprep.subr.mxu0 0.0
      %626 = vmatpush1.msra.mxu0 0.0
      %627 = vmatprep.subr.mxu0 0.0
      %628 = vmatpush1.msra.mxu0 0.0
      %629 = vmatprep.subr.mxu0 0.0
      %630 = vmatpush1.msra.mxu0 0.0
      %631 = vmatprep.subr.mxu0 0.0
      %632 = vmatpush1.msra.mxu0 0.0
      %633 = vmatprep.mubr.f32.mxu0 %v567
      %634 = vmatmul.mubr.f32.gmra.mrb[0].mxu0 %v563
      %v635 = vpop.f32.mrb[0].mxu0
      %v636 = vadd.f32 0.0, %v635
      %v637 = vpop.f32.mrb[0].mxu0
      %v638 = vadd.f32 0.0, %v637
      %639 = vdwg.mxu0
      %v640 = vsel %vm566, %v562, 0
      %642 = vmatprep.subr.mxu0 %v490
      %643 = vmatpush1.msra.mxu0 %v489
      %644 = vmatprep.subr.mxu0 %v492
      %645 = vmatpush1.msra.mxu0 %v491
      %646 = vmatprep.subr.mxu0 %v494
      %647 = vmatpush1.msra.mxu0 %v493
      %648 = vmatprep.subr.mxu0 %v496
      %649 = vmatpush1.msra.mxu0 %v495
      %650 = vmatprep.subr.mxu0 %v498
      %651 = vmatpush1.msra.mxu0 %v497
      %652 = vmatprep.subr.mxu0 %v500
      %653 = vmatpush1.msra.mxu0 %v499
      %654 = vmatprep.subr.mxu0 %v502
      %655 = vmatpush1.msra.mxu0 %v501
      %656 = vmatprep.subr.mxu0 %v504
      %657 = vmatpush1.msra.mxu0 %v503
      %658 = vmatprep.subr.mxu0 %v506
      %659 = vmatpush1.msra.mxu0 %v505
      %660 = vmatprep.subr.mxu0 %v508
      %661 = vmatpush1.msra.mxu0 %v507
      %662 = vmatprep.subr.mxu0 %v510
      %663 = vmatpush1.msra.mxu0 %v509
      %664 = vmatprep.subr.mxu0 %v512
      %665 = vmatpush1.msra.mxu0 %v511
      %666 = vmatprep.subr.mxu0 %v514
      %667 = vmatpush1.msra.mxu0 %v513
      %668 = vmatprep.subr.mxu0 %v516
      %669 = vmatpush1.msra.mxu0 %v515
      %670 = vmatprep.subr.mxu0 %v518
      %671 = vmatpush1.msra.mxu0 %v517
      %672 = vmatprep.subr.mxu0 %v520
      %673 = vmatpush1.msra.mxu0 %v519
      %674 = vmatprep.subr.mxu0 %v522
      %675 = vmatpush1.msra.mxu0 %v521
      %676 = vmatprep.subr.mxu0 %v524
      %677 = vmatpush1.msra.mxu0 %v523
      %678 = vmatprep.subr.mxu0 0.0
      %679 = vmatpush1.msra.mxu0 0.0
      %680 = vmatprep.subr.mxu0 0.0
      %681 = vmatpush1.msra.mxu0 0.0
      %682 = vmatprep.subr.mxu0 0.0
      %683 = vmatpush1.msra.mxu0 0.0
      %684 = vmatprep.subr.mxu0 0.0
      %685 = vmatpush1.msra.mxu0 0.0
      %686 = vmatprep.subr.mxu0 0.0
      %687 = vmatpush1.msra.mxu0 0.0
      %688 = vmatprep.subr.mxu0 0.0
      %689 = vmatpush1.msra.mxu0 0.0
      %690 = vmatprep.subr.mxu0 0.0
      %691 = vmatpush1.msra.mxu0 0.0
      %692 = vmatprep.subr.mxu0 0.0
      %693 = vmatpush1.msra.mxu0 0.0
      %694 = vmatprep.subr.mxu0 0.0
      %695 = vmatpush1.msra.mxu0 0.0
      %696 = vmatprep.subr.mxu0 0.0
      %697 = vmatpush1.msra.mxu0 0.0
      %698 = vmatprep.subr.mxu0 0.0
      %699 = vmatpush1.msra.mxu0 0.0
      %700 = vmatprep.subr.mxu0 0.0
      %701 = vmatpush1.msra.mxu0 0.0
      %702 = vmatprep.subr.mxu0 0.0
      %703 = vmatpush1.msra.mxu0 0.0
      %704 = vmatprep.subr.mxu0 0.0
      %705 = vmatpush1.msra.mxu0 0.0
      %706 = vmatprep.mubr.f32.mxu0 %v640
      %707 = vmatmul.mubr.f32.gmra.mrb[0].mxu0 %v488
      %v708 = vpop.f32.mrb[0].mxu0
      %v709 = vadd.f32 %v636, %v708
      %v710 = vpop.f32.mrb[0].mxu0
      %v711 = vadd.f32 %v638, %v710
      %712 = vdwg.mxu0
      %v713 = vld [vmem:[%s9] sm:$0xf]
      %v716 = vcombine.low %v709, %v711
      %v718 = vunpack.c.l.s4 1983009808
      %v719 = vunpack.c.0.s8 %v718
      %v720 = vlaneseq
      %v721 = vshrl.u32 %v720, 7
      %v722 = vsub.s32 %v719, %v721
      %v723 = vrot.slane %v716, %v722
      %v725 = vadd.f32 %v458, %v723
      %v726 = vld [vmem:[%s10] sm:$0xf]
      %vm727 = vcmask 31744
      %v729 = vsel %vm727, %v726, 0
      %vm731 = vcmask 1043456
      %v733 = vsel %vm731, %v427, 0
      %v736 = vsel %vm731, %v428, 0
      %738 = vmatprep.subr.mxu0 %v736
      %739 = vmatpush1.msra.mxu0 %v733
      %740 = vmatprep.subr.mxu0 0.0
      %741 = vmatpush1.msra.mxu0 0.0
      %742 = vmatprep.subr.mxu0 0.0
      %743 = vmatpush1.msra.mxu0 0.0
      %744 = vmatprep.subr.mxu0 0.0
      %745 = vmatpush1.msra.mxu0 0.0
      %746 = vmatprep.subr.mxu0 0.0
      %747 = vmatpush1.msra.mxu0 0.0
      %748 = vmatprep.subr.mxu0 0.0
      %749 = vmatpush1.msra.mxu0 0.0
      %750 = vmatprep.subr.mxu0 0.0
      %751 = vmatpush1.msra.mxu0 0.0
      %752 = vmatprep.subr.mxu0 0.0
      %753 = vmatpush1.msra.mxu0 0.0
      %754 = vmatprep.subr.mxu0 0.0
      %755 = vmatpush1.msra.mxu0 0.0
      %756 = vmatprep.subr.mxu0 0.0
      %757 = vmatpush1.msra.mxu0 0.0
      %758 = vmatprep.subr.mxu0 0.0
      %759 = vmatpush1.msra.mxu0 0.0
      %760 = vmatprep.subr.mxu0 0.0
      %761 = vmatpush1.msra.mxu0 0.0
      %762 = vmatprep.subr.mxu0 0.0
      %763 = vmatpush1.msra.mxu0 0.0
      %764 = vmatprep.subr.mxu0 0.0
      %765 = vmatpush1.msra.mxu0 0.0
      %766 = vmatprep.subr.mxu0 0.0
      %767 = vmatpush1.msra.mxu0 0.0
      %768 = vmatprep.subr.mxu0 0.0
      %769 = vmatpush1.msra.mxu0 0.0
      %770 = vmatprep.subr.mxu0 0.0
      %771 = vmatpush1.msra.mxu0 0.0
      %772 = vmatprep.subr.mxu0 0.0
      %773 = vmatpush1.msra.mxu0 0.0
      %774 = vmatprep.subr.mxu0 0.0
      %775 = vmatpush1.msra.mxu0 0.0
      %776 = vmatprep.subr.mxu0 0.0
      %777 = vmatpush1.msra.mxu0 0.0
      %778 = vmatprep.subr.mxu0 0.0
      %779 = vmatpush1.msra.mxu0 0.0
      %780 = vmatprep.subr.mxu0 0.0
      %781 = vmatpush1.msra.mxu0 0.0
      %782 = vmatprep.subr.mxu0 0.0
      %783 = vmatpush1.msra.mxu0 0.0
      %784 = vmatprep.subr.mxu0 0.0
      %785 = vmatpush1.msra.mxu0 0.0
      %786 = vmatprep.subr.mxu0 0.0
      %787 = vmatpush1.msra.mxu0 0.0
      %788 = vmatprep.subr.mxu0 0.0
      %789 = vmatpush1.msra.mxu0 0.0
      %790 = vmatprep.subr.mxu0 0.0
      %791 = vmatpush1.msra.mxu0 0.0
      %792 = vmatprep.subr.mxu0 0.0
      %793 = vmatpush1.msra.mxu0 0.0
      %794 = vmatprep.subr.mxu0 0.0
      %795 = vmatpush1.msra.mxu0 0.0
      %796 = vmatprep.subr.mxu0 0.0
      %797 = vmatpush1.msra.mxu0 0.0
      %798 = vmatprep.subr.mxu0 0.0
      %799 = vmatpush1.msra.mxu0 0.0
      %800 = vmatprep.subr.mxu0 0.0
      %801 = vmatpush1.msra.mxu0 0.0
      %802 = vmatprep.mubr.f32.mxu0 0.0
      %803 = vmatmul.mubr.f32.gmra.mrb[0].mxu0 %v729
      %v804 = vpop.f32.mrb[0].mxu0
      %v805 = vadd.f32 0.0, %v804
      %v806 = vpop.f32.mrb[0].mxu0
      %v807 = vadd.f32 0.0, %v806
      %808 = vdwg.mxu0
      %v811 = vunpack.c.l.s4 1983009808
      %v812 = vunpack.c.0.s8 %v811
      %v813 = vlaneseq
      %v814 = vshrl.u32 %v813, 7
      %v815 = vsub.s32 %v812, %v814
      %v816 = vrot.slane %v725, %v815
      %v817 = vcombine.high %v816, %v816
      %vm818 = vcmask 15360
      %v820 = vsel %vm818, %v713, 0
      %vm822 = vcmask 1041408
      %v823 = vsel %vm822, %v816, 0
      %v825 = vsel %vm822, %v817, 0
      %827 = vmatprep.subr.mxu0 %v825
      %828 = vmatpush1.msra.mxu0 %v823
      %829 = vmatprep.subr.mxu0 0.0
      %830 = vmatpush1.msra.mxu0 0.0
      %831 = vmatprep.subr.mxu0 0.0
      %832 = vmatpush1.msra.mxu0 0.0
      %833 = vmatprep.subr.mxu0 0.0
      %834 = vmatpush1.msra.mxu0 0.0
      %835 = vmatprep.subr.mxu0 0.0
      %836 = vmatpush1.msra.mxu0 0.0
      %837 = vmatprep.subr.mxu0 0.0
      %838 = vmatpush1.msra.mxu0 0.0
      %839 = vmatprep.subr.mxu0 0.0
      %840 = vmatpush1.msra.mxu0 0.0
      %841 = vmatprep.subr.mxu0 0.0
      %842 = vmatpush1.msra.mxu0 0.0
      %843 = vmatprep.subr.mxu0 0.0
      %844 = vmatpush1.msra.mxu0 0.0
      %845 = vmatprep.subr.mxu0 0.0
      %846 = vmatpush1.msra.mxu0 0.0
      %847 = vmatprep.subr.mxu0 0.0
      %848 = vmatpush1.msra.mxu0 0.0
      %849 = vmatprep.subr.mxu0 0.0
      %850 = vmatpush1.msra.mxu0 0.0
      %851 = vmatprep.subr.mxu0 0.0
      %852 = vmatpush1.msra.mxu0 0.0
      %853 = vmatprep.subr.mxu0 0.0
      %854 = vmatpush1.msra.mxu0 0.0
      %855 = vmatprep.subr.mxu0 0.0
      %856 = vmatpush1.msra.mxu0 0.0
      %857 = vmatprep.subr.mxu0 0.0
      %858 = vmatpush1.msra.mxu0 0.0
      %859 = vmatprep.subr.mxu0 0.0
      %860 = vmatpush1.msra.mxu0 0.0
      %861 = vmatprep.subr.mxu0 0.0
      %862 = vmatpush1.msra.mxu0 0.0
      %863 = vmatprep.subr.mxu0 0.0
      %864 = vmatpush1.msra.mxu0 0.0
      %865 = vmatprep.subr.mxu0 0.0
      %866 = vmatpush1.msra.mxu0 0.0
      %867 = vmatprep.subr.mxu0 0.0
      %868 = vmatpush1.msra.mxu0 0.0
      %869 = vmatprep.subr.mxu0 0.0
      %870 = vmatpush1.msra.mxu0 0.0
      %871 = vmatprep.subr.mxu0 0.0
      %872 = vmatpush1.msra.mxu0 0.0
      %873 = vmatprep.subr.mxu0 0.0
      %874 = vmatpush1.msra.mxu0 0.0
      %875 = vmatprep.subr.mxu0 0.0
      %876 = vmatpush1.msra.mxu0 0.0
      %877 = vmatprep.subr.mxu0 0.0
      %878 = vmatpush1.msra.mxu0 0.0
      %879 = vmatprep.subr.mxu0 0.0
      %880 = vmatpush1.msra.mxu0 0.0
      %881 = vmatprep.subr.mxu0 0.0
      %882 = vmatpush1.msra.mxu0 0.0
      %883 = vmatprep.subr.mxu0 0.0
      %884 = vmatpush1.msra.mxu0 0.0
      %885 = vmatprep.subr.mxu0 0.0
      %886 = vmatpush1.msra.mxu0 0.0
      %887 = vmatprep.subr.mxu0 0.0
      %888 = vmatpush1.msra.mxu0 0.0
      %889 = vmatprep.subr.mxu0 0.0
      %890 = vmatpush1.msra.mxu0 0.0
      %891 = vmatprep.mubr.f32.mxu0 0.0
      %892 = vmatmul.mubr.f32.gmra.mrb[0].mxu0 %v820
      %v893 = vpop.f32.mrb[0].mxu0
      %v894 = vadd.f32 %v805, %v893
      %v895 = vpop.f32.mrb[0].mxu0
      %v896 = vadd.f32 %v807, %v895
      %897 = vdwg.mxu0
      %v900 = vcombine.low %v894, %v896
      %902 = vst [vmem:[%s426] sm:$0xff] %v900
      %p903 = scmp.lt.s32.totalorder %s22, 1
      %s904 = scalar_select %p903, %s22, 1
      %s905 = smul.addr %s904, 2
      %s906 = smul.addr %s905, 4
      %s907 = scalar_lea.vmem %s11, %s906
      // Predicated region
      $region65: #{ffc_forward.5} parent=63 // pred_check
        %p908 = pneg %p286
      $region66: #{ffc_forward.5} parent=63 // pred_check_branch
        %910 = sbr.rel (%p908) target = $region68
      $region67: #{ffc_forward.5} parent=63 // pred_region
        _
      $region68: #{ffc_forward.5} parent=63 // pred_fallthru
        _
    $region64: #{ffc_forward.5} parent=5 // pred_fallthru
      _
    %p911 = scmp.le.s32.totalorder 2, %s17
    // Predicated region
    $region69: #{ffc_forward.5} parent=5 // pred_check
      %p912 = pneg %p911
    $region70: #{ffc_forward.5} parent=5 // pred_check_branch
      %914 = sbr.rel (%p912) target = $region72
    $region71: #{ffc_forward.5} parent=5 // pred_region
      %s915 = ssub.s32 %s17, 2
      // Predicated region
      $region73: #{ffc_forward.5} parent=71 // pred_check
        %p916 = pneg %p292
      $region74: #{ffc_forward.5} parent=71 // pred_check_branch
        %918 = sbr.rel (%p916) target = $region76
      $region75: #{ffc_forward.5} parent=71 // pred_region
        %p919 = scmp.lt.s32.totalorder %s23, 1
        %s920 = scalar_select %p919, %s23, 1
        %s921 = smul.addr %s920, 2
        %s922 = smul.addr %s921, 4
        %s923 = scalar_lea.vmem %s11, %s922
      $region76: #{ffc_forward.5} parent=71 // pred_fallthru
        _
    $region72: #{ffc_forward.5} parent=5 // pred_fallthru
      _
  $region6: #{ffc_forward.5} parent=0 // loop_footer
    %s21 = sadd.s32 1, %s17
  $region7: #{ffc_forward.5} parent=0 // loop_footer_branch
    %16 = sbr.rel target = $region3
  $region8: #{ffc_forward.5} parent=0 // loop_exit
    _

</llo_original>
